<compile_context>
chip_gen: v7x
topology: tpu7x:2x2x1
jax: 0.10.0
libtpu: 0.0.40
codegen_flags: <defaults>
</compile_context>

<pallas_src>
import functools
import math

import jax
import jax.numpy as jnp
import numpy as np
from jax.experimental import pallas as pl
from jax.experimental.pallas import tpu as pltpu


# ---------------------------------------------------------------------------
# Pallas kernel
# ---------------------------------------------------------------------------
def _lbir_kernel(
    x_ref,        # (L*B, I)   bf16  inputs, time-major flattened (row t*B+b)
    mask_ref,     # (L*B, 1)   f32   1.0 where t < input_lens[b]
    w1_ref,       # (I, H)     bf16  lin_1 weight^T
    b1_ref,       # (1, H)     f32   lin_1 bias
    wih_ref,      # (H, 8H)    bf16  [fwd W_ih^T | bwd W_ih^T], gate order [i,f,o,g]
    bg_ref,       # (1, 8H)    f32   [fwd b_ih+b_hh | bwd b_ih+b_hh], same order
    whh_f_ref,    # (H, 4H)    bf16  fwd  W_hh^T, gate order [i,f,o,g]
    whh_b_ref,    # (H, 4H)    bf16  bwd  W_hh^T, gate order [i,f,o,g]
    out_ref,      # (L*B, 2H)  f32   output: [forward | backward]
    gx_ref,       # scratch (L*B, 8H) f32  precomputed input-gate terms, both dirs
    *,
    L,
    B,
):
    H = whh_f_ref.shape[0]
    G = 4 * H
    f32 = jnp.float32
    bf16 = jnp.bfloat16

    # ---- Hoisted projections: two L*B-row MXU matmuls, biases folded in. ----
    enc_x = jnp.dot(x_ref[...], w1_ref[...], preferred_element_type=f32) + b1_ref[...]
    gx_ref[...] = (
        jnp.dot(enc_x.astype(bf16), wih_ref[...], preferred_element_type=f32)
        + bg_ref[...]
    )

    # Hoist recurrent weights out of the loop.
    whh_f = whh_f_ref[...]
    whh_b = whh_b_ref[...]

    def step(t, h, c, whh, gcol, ocol):
        idx = pl.multiple_of(t * B, B)                     # sublane-aligned row offset
        gates = gx_ref[pl.ds(idx, B), gcol:gcol + G] + jnp.dot(
            h.astype(bf16), whh, preferred_element_type=f32)
        sg = jax.nn.sigmoid(gates[:, : 3 * H])             # [i | f | o] contiguous
        g = jnp.tanh(gates[:, 3 * H:])
        c_new = sg[:, H:2 * H] * c + sg[:, :H] * g
        h_new = sg[:, 2 * H:] * jnp.tanh(c_new)
        # pack_padded_sequence semantics: padded steps do not advance the state
        # (essential so the reverse direction starts at each sequence's true end).
        m = mask_ref[pl.ds(idx, B), :]                     # (B, 1)
        h = h + m * (h_new - h)
        c = c + m * (c_new - c)
        # pad_packed_sequence: output is zero past each length (m == 0 there).
        out_ref[pl.ds(idx, B), ocol:ocol + H] = h * m
        return h, c

    zeros = jnp.zeros((B, H), f32)

    def body(t, carry):
        h_f, c_f, h_b, c_b = carry
        h_f, c_f = step(t, h_f, c_f, whh_f, 0, 0)          # forward:  time t
        h_b, c_b = step(L - 1 - t, h_b, c_b, whh_b, G, H)  # backward: time L-1-t
        return (h_f, c_f, h_b, c_b)

    jax.lax.fori_loop(0, L, body, (zeros, zeros, zeros, zeros), unroll=True)


# ---------------------------------------------------------------------------
# Wrapper: layout/weight transposes + pallas_call plumbing.
# ---------------------------------------------------------------------------
def lbir_encoder(params, inputs, input_lens):
    """inputs: (B, L, I) float32, input_lens: (B,) int32 -> (B, L, 2H) float32."""
    B, L, I = inputs.shape
    H = params["w1"].shape[0]
    f32, bf16 = jnp.float32, jnp.bfloat16

    # Time-major flatten: row t*B + b corresponds to (time t, batch b).
    x_lb = jnp.transpose(inputs.astype(f32), (1, 0, 2)).reshape(L * B, I)
    mask_bl = (jnp.arange(L)[None, :] < input_lens[:, None]).astype(f32)   # (B, L)
    mask_lb = jnp.transpose(mask_bl).reshape(L * B, 1)

    # Gate-column permutation: PyTorch [i, f, g, o] -> [i, f, o, g] so sigmoid
    # covers one contiguous 0:3H slice in-kernel.
    perm = np.concatenate(
        [np.arange(0, 2 * H), np.arange(3 * H, 4 * H), np.arange(2 * H, 3 * H)])

    wih_f = params["wih_f"][perm]          # (4H, H)
    wih_b = params["wih_b"][perm]
    whh_f = params["whh_f"][perm]
    whh_b = params["whh_b"][perm]
    b_f = (params["bih_f"] + params["bhh_f"])[perm]
    b_b = (params["bih_b"] + params["bhh_b"])[perm]

    wih_cat = jnp.concatenate([wih_f.T, wih_b.T], axis=1)   # (H, 8H)
    bg_cat = jnp.concatenate([b_f, b_b])[None, :]            # (1, 8H)

    args = (
        x_lb.astype(bf16),
        mask_lb,
        params["w1"].T.astype(bf16),                          # (I, H)
        params["b1"][None, :].astype(f32),
        wih_cat.astype(bf16),
        bg_cat.astype(f32),
        whh_f.T.astype(bf16),                                  # (H, 4H)
        whh_b.T.astype(bf16),
    )

    # Explicit VMEM budget sized from the actual resident buffers (+ headroom).
    resident = sum(int(a.size) * a.dtype.itemsize for a in args)
    resident += L * B * 2 * H * 4        # output
    resident += L * B * 8 * H * 4        # gx scratch
    vmem_limit = int(min(max(2 * resident, 16 << 20), 64 << 20))

    vmem = lambda: pl.BlockSpec(memory_space=pltpu.MemorySpace.VMEM)
    out2 = pl.pallas_call(
        functools.partial(_lbir_kernel, L=L, B=B),
        out_shape=jax.ShapeDtypeStruct((L * B, 2 * H), f32),
        in_specs=[vmem() for _ in args],
        out_specs=vmem(),
        scratch_shapes=[pltpu.VMEM((L * B, 8 * H), f32)],
        compiler_params=pltpu.CompilerParams(vmem_limit_bytes=vmem_limit),
    )(*args)

    return jnp.transpose(out2.reshape(L, B, 2 * H), (1, 0, 2))


# ---------------------------------------------------------------------------
# Deterministic parameter construction (shapes from the module __init__).
# ---------------------------------------------------------------------------
def make_params(key, I, H):
    ks = jax.random.split(key, 10)
    u = lambda k, shape, s: jax.random.uniform(k, shape, jnp.float32, -s, s)
    s1, sr = 1.0 / math.sqrt(I), 1.0 / math.sqrt(H)
    return dict(
        # lin_1: Linear(size_list[0] -> size_list[3])
        w1=u(ks[0], (H, I), s1), b1=u(ks[1], (H,), s1),
        # bidirectional LSTM(H -> H), num_layers=1
        wih_f=u(ks[2], (4 * H, H), sr), whh_f=u(ks[3], (4 * H, H), sr),
        bih_f=u(ks[4], (4 * H,), sr), bhh_f=u(ks[5], (4 * H,), sr),
        wih_b=u(ks[6], (4 * H, H), sr), whh_b=u(ks[7], (4 * H, H), sr),
        bih_b=u(ks[8], (4 * H,), sr), bhh_b=u(ks[9], (4 * H,), sr),
    )


# ---------------------------------------------------------------------------
# Pure-JAX reference (f32, PyTorch gate order, plain loops) for validation.
# ---------------------------------------------------------------------------
def _lstm_cell_ref(x, h, c, wih, whh, bih, bhh):
    gates = x @ wih.T + bih + h @ whh.T + bhh
    H = h.shape[-1]
    i = jax.nn.sigmoid(gates[:, :H])
    f = jax.nn.sigmoid(gates[:, H:2 * H])
    g = jnp.tanh(gates[:, 2 * H:3 * H])
    o = jax.nn.sigmoid(gates[:, 3 * H:])
    c = f * c + i * g
    h = o * jnp.tanh(c)
    return h, c


def reference(params, inputs, input_lens):
    B, L, _ = inputs.shape
    H = params["w1"].shape[0]
    enc = inputs @ params["w1"].T + params["b1"]                       # (B, L, H)
    mask = (jnp.arange(L)[None, :] < input_lens[:, None]).astype(jnp.float32)

    h = jnp.zeros((B, H)); c = jnp.zeros((B, H)); outs_f = []
    for t in range(L):
        hn, cn = _lstm_cell_ref(enc[:, t], h, c, params["wih_f"], params["whh_f"],
                                params["bih_f"], params["bhh_f"])
        m = mask[:, t:t + 1]
        h = m * hn + (1 - m) * h
        c = m * cn + (1 - m) * c
        outs_f.append(h * m)

    h = jnp.zeros((B, H)); c = jnp.zeros((B, H)); outs_b = [None] * L
    for t in range(L - 1, -1, -1):
        hn, cn = _lstm_cell_ref(enc[:, t], h, c, params["wih_b"], params["whh_b"],
                                params["bih_b"], params["bhh_b"])
        m = mask[:, t:t + 1]
        h = m * hn + (1 - m) * h
        c = m * cn + (1 - m) * c
        outs_b[t] = h * m

    fwd = jnp.stack(outs_f, axis=1)
    bwd = jnp.stack(outs_b, axis=1)
    return jnp.concatenate([fwd, bwd], axis=-1)                        # (B, L, 2H)


if __name__ == "__main__":
    key = jax.random.PRNGKey(0)
    B, L = 8, 8           # B multiple of 8 -> sublane-aligned per-step row slices
    I, H = 16, 32         # size_list[0] = I, size_list[3] = H  (4H = 128 lanes)

    pkey, xkey = jax.random.split(key)
    params = make_params(pkey, I, H)
    inputs = jax.random.normal(xkey, (B, L, I), jnp.float32)
    input_lens = jnp.array([L, L - 1, L - 3, 2, L, 5, 1, L - 2], jnp.int32)

    out = lbir_encoder(params, inputs, input_lens)
    jax.block_until_ready(out)

    assert out.shape == (B, L, 2 * H)

    ref = reference(params, inputs, input_lens)
    # bf16 MXU operands -> loosened tolerance vs the f32 reference.
    np.testing.assert_allclose(np.asarray(out), np.asarray(ref), rtol=3e-2, atol=3e-2)

    print("KERNEL_OK")
</pallas_src>

<mosaic_0001>
module attributes {stable_mosaic.version = 11 : i64} {
  func.func @_lbir_kernel(%arg0: memref<64x16xbf16, #tpu.memory_space<vmem>>, %arg1: memref<64x1xf32, #tpu.memory_space<vmem>>, %arg2: memref<16x32xbf16, #tpu.memory_space<vmem>>, %arg3: memref<1x32xf32, #tpu.memory_space<vmem>>, %arg4: memref<32x256xbf16, #tpu.memory_space<vmem>>, %arg5: memref<1x256xf32, #tpu.memory_space<vmem>>, %arg6: memref<32x128xbf16, #tpu.memory_space<vmem>>, %arg7: memref<32x128xbf16, #tpu.memory_space<vmem>>, %arg8: memref<64x64xf32, #tpu.memory_space<vmem>>, %arg9: memref<64x256xf32, #tpu.memory_space<vmem>>) attributes {dimension_semantics = [], scalar_prefetch = 0 : i64, scratch_operands = 1 : i64, tpu.core_type = #tpu.core_type<tc>} {
    %c0 = arith.constant 0 : index
    %c0_0 = arith.constant 0 : index
    %0 = vector.load %arg0[%c0, %c0_0] : memref<64x16xbf16, #tpu.memory_space<vmem>>, vector<64x16xbf16>
    %c0_1 = arith.constant 0 : index
    %c0_2 = arith.constant 0 : index
    %1 = vector.load %arg2[%c0_1, %c0_2] : memref<16x32xbf16, #tpu.memory_space<vmem>>, vector<16x32xbf16>
    %cst = arith.constant dense<0.000000e+00> : vector<64x32xf32>
    %2 = tpu.matmul %0, %1, %cst {dimension_numbers = #tpu.dot_dimension_numbers<[1], [0], [0], [1], [0, 0, 1, 1], [], []>} : vector<64x16xbf16>, vector<16x32xbf16>, vector<64x32xf32> -> vector<64x32xf32>
    %c0_3 = arith.constant 0 : index
    %c0_4 = arith.constant 0 : index
    %3 = vector.load %arg3[%c0_3, %c0_4] : memref<1x32xf32, #tpu.memory_space<vmem>>, vector<1x32xf32>
    %4 = vector.broadcast %3 : vector<1x32xf32> to vector<64x32xf32>
    %5 = arith.addf %2, %4 : vector<64x32xf32>
    %6 = arith.truncf %5 : vector<64x32xf32> to vector<64x32xbf16>
    %c0_5 = arith.constant 0 : index
    %c0_6 = arith.constant 0 : index
    %7 = vector.load %arg4[%c0_5, %c0_6] : memref<32x256xbf16, #tpu.memory_space<vmem>>, vector<32x256xbf16>
    %cst_7 = arith.constant dense<0.000000e+00> : vector<64x256xf32>
    %8 = tpu.matmul %6, %7, %cst_7 {dimension_numbers = #tpu.dot_dimension_numbers<[1], [0], [0], [1], [0, 0, 1, 1], [], []>} : vector<64x32xbf16>, vector<32x256xbf16>, vector<64x256xf32> -> vector<64x256xf32>
    %c0_8 = arith.constant 0 : index
    %c0_9 = arith.constant 0 : index
    %9 = vector.load %arg5[%c0_8, %c0_9] : memref<1x256xf32, #tpu.memory_space<vmem>>, vector<1x256xf32>
    %10 = vector.broadcast %9 : vector<1x256xf32> to vector<64x256xf32>
    %11 = arith.addf %8, %10 : vector<64x256xf32>
    %c0_10 = arith.constant 0 : index
    %c0_11 = arith.constant 0 : index
    %12 = vector.load %arg9[%c0_10, %c0_11] : memref<64x256xf32, #tpu.memory_space<vmem>>, vector<64x256xf32>
    tpu.vector_store %arg9[%c0_10, %c0_11], %11 {strides = array<i32>} : memref<64x256xf32, #tpu.memory_space<vmem>>, vector<64x256xf32>,
    %c0_12 = arith.constant 0 : index
    %c0_13 = arith.constant 0 : index
    %13 = vector.load %arg6[%c0_12, %c0_13] : memref<32x128xbf16, #tpu.memory_space<vmem>>, vector<32x128xbf16>
    %c0_14 = arith.constant 0 : index
    %c0_15 = arith.constant 0 : index
    %14 = vector.load %arg7[%c0_14, %c0_15] : memref<32x128xbf16, #tpu.memory_space<vmem>>, vector<32x128xbf16>
    %cst_16 = arith.constant 0.000000e+00 : f32
    %15 = vector.broadcast %cst_16 : f32 to vector<8x32xf32>
    %c0_i32 = arith.constant 0 : i32
    %c8_i32 = arith.constant 8 : i32
    %16 = arith.muli %c0_i32, %c8_i32 : i32
    %17 = tpu.assume_multiple %16, 8 : i32
    %18 = arith.index_cast %17 : i32 to index
    %c0_17 = arith.constant 0 : index
    %19 = vector.load %arg9[%18, %c0_17] : memref<64x256xf32, #tpu.memory_space<vmem>>, vector<8x128xf32>
    %20 = arith.truncf %15 : vector<8x32xf32> to vector<8x32xbf16>
    %cst_18 = arith.constant dense<0.000000e+00> : vector<8x128xf32>
    %21 = tpu.matmul %20, %13, %cst_18 {dimension_numbers = #tpu.dot_dimension_numbers<[1], [0], [0], [1], [0, 0, 1, 1], [], []>} : vector<8x32xbf16>, vector<32x128xbf16>, vector<8x128xf32> -> vector<8x128xf32>
    %22 = arith.addf %19, %21 : vector<8x128xf32>
    %23 = vector.extract_strided_slice %22 {offsets = [0, 0], sizes = [8, 96], strides = [1, 1]} : vector<8x128xf32> to vector<8x96xf32>
    %24 = arith.negf %23 : vector<8x96xf32>
    %25 = math.exp %24 : vector<8x96xf32>
    %cst_19 = arith.constant 1.000000e+00 : f32
    %26 = vector.broadcast %cst_19 : f32 to vector<8x96xf32>
    %27 = arith.addf %26, %25 : vector<8x96xf32>
    %28 = arith.divf %26, %27 : vector<8x96xf32>
    %29 = vector.extract_strided_slice %22 {offsets = [0, 96], sizes = [8, 32], strides = [1, 1]} : vector<8x128xf32> to vector<8x32xf32>
    %30 = math.tanh %29 : vector<8x32xf32>
    %31 = vector.extract_strided_slice %28 {offsets = [0, 32], sizes = [8, 32], strides = [1, 1]} : vector<8x96xf32> to vector<8x32xf32>
    %32 = arith.mulf %31, %15 : vector<8x32xf32>
    %33 = vector.extract_strided_slice %28 {offsets = [0, 0], sizes = [8, 32], strides = [1, 1]} : vector<8x96xf32> to vector<8x32xf32>
    %34 = arith.mulf %33, %30 : vector<8x32xf32>
    %35 = arith.addf %32, %34 : vector<8x32xf32>
    %36 = vector.extract_strided_slice %28 {offsets = [0, 64], sizes = [8, 32], strides = [1, 1]} : vector<8x96xf32> to vector<8x32xf32>
    %37 = math.tanh %35 : vector<8x32xf32>
    %38 = arith.mulf %36, %37 : vector<8x32xf32>
    %39 = arith.index_cast %17 : i32 to index
    %c0_20 = arith.constant 0 : index
    %40 = vector.load %arg1[%39, %c0_20] : memref<64x1xf32, #tpu.memory_space<vmem>>, vector<8x1xf32>
    %41 = arith.subf %38, %15 : vector<8x32xf32>
    %42 = vector.broadcast %40 : vector<8x1xf32> to vector<8x32xf32>
    %43 = arith.mulf %42, %41 : vector<8x32xf32>
    %44 = arith.addf %15, %43 : vector<8x32xf32>
    %45 = arith.subf %35, %15 : vector<8x32xf32>
    %46 = vector.broadcast %40 : vector<8x1xf32> to vector<8x32xf32>
    %47 = arith.mulf %46, %45 : vector<8x32xf32>
    %48 = arith.addf %15, %47 : vector<8x32xf32>
    %49 = vector.broadcast %40 : vector<8x1xf32> to vector<8x32xf32>
    %50 = arith.mulf %44, %49 : vector<8x32xf32>
    %51 = arith.index_cast %17 : i32 to index
    %c0_21 = arith.constant 0 : index
    %52 = vector.load %arg8[%51, %c0_21] : memref<64x64xf32, #tpu.memory_space<vmem>>, vector<8x32xf32>
    tpu.vector_store %arg8[%51, %c0_21], %50 {strides = array<i32>} : memref<64x64xf32, #tpu.memory_space<vmem>>, vector<8x32xf32>,
    %c7_i32 = arith.constant 7 : i32
    %53 = arith.subi %c7_i32, %c0_i32 : i32
    %c8_i32_22 = arith.constant 8 : i32
    %54 = arith.muli %53, %c8_i32_22 : i32
    %55 = tpu.assume_multiple %54, 8 : i32
    %56 = arith.index_cast %55 : i32 to index
    %c128 = arith.constant 128 : index
    %57 = vector.load %arg9[%56, %c128] : memref<64x256xf32, #tpu.memory_space<vmem>>, vector<8x128xf32>
    %58 = arith.truncf %15 : vector<8x32xf32> to vector<8x32xbf16>
    %cst_23 = arith.constant dense<0.000000e+00> : vector<8x128xf32>
    %59 = tpu.matmul %58, %14, %cst_23 {dimension_numbers = #tpu.dot_dimension_numbers<[1], [0], [0], [1], [0, 0, 1, 1], [], []>} : vector<8x32xbf16>, vector<32x128xbf16>, vector<8x128xf32> -> vector<8x128xf32>
    %60 = arith.addf %57, %59 : vector<8x128xf32>
    %61 = vector.extract_strided_slice %60 {offsets = [0, 0], sizes = [8, 96], strides = [1, 1]} : vector<8x128xf32> to vector<8x96xf32>
    %62 = arith.negf %61 : vector<8x96xf32>
    %63 = math.exp %62 : vector<8x96xf32>
    %cst_24 = arith.constant 1.000000e+00 : f32
    %64 = vector.broadcast %cst_24 : f32 to vector<8x96xf32>
    %65 = arith.addf %64, %63 : vector<8x96xf32>
    %66 = arith.divf %64, %65 : vector<8x96xf32>
    %67 = vector.extract_strided_slice %60 {offsets = [0, 96], sizes = [8, 32], strides = [1, 1]} : vector<8x128xf32> to vector<8x32xf32>
    %68 = math.tanh %67 : vector<8x32xf32>
    %69 = vector.extract_strided_slice %66 {offsets = [0, 32], sizes = [8, 32], strides = [1, 1]} : vector<8x96xf32> to vector<8x32xf32>
    %70 = arith.mulf %69, %15 : vector<8x32xf32>
    %71 = vector.extract_strided_slice %66 {offsets = [0, 0], sizes = [8, 32], strides = [1, 1]} : vector<8x96xf32> to vector<8x32xf32>
    %72 = arith.mulf %71, %68 : vector<8x32xf32>
    %73 = arith.addf %70, %72 : vector<8x32xf32>
    %74 = vector.extract_strided_slice %66 {offsets = [0, 64], sizes = [8, 32], strides = [1, 1]} : vector<8x96xf32> to vector<8x32xf32>
    %75 = math.tanh %73 : vector<8x32xf32>
    %76 = arith.mulf %74, %75 : vector<8x32xf32>
    %77 = arith.index_cast %55 : i32 to index
    %c0_25 = arith.constant 0 : index
    %78 = vector.load %arg1[%77, %c0_25] : memref<64x1xf32, #tpu.memory_space<vmem>>, vector<8x1xf32>
    %79 = arith.subf %76, %15 : vector<8x32xf32>
    %80 = vector.broadcast %78 : vector<8x1xf32> to vector<8x32xf32>
    %81 = arith.mulf %80, %79 : vector<8x32xf32>
    %82 = arith.addf %15, %81 : vector<8x32xf32>
    %83 = arith.subf %73, %15 : vector<8x32xf32>
    %84 = vector.broadcast %78 : vector<8x1xf32> to vector<8x32xf32>
    %85 = arith.mulf %84, %83 : vector<8x32xf32>
    %86 = arith.addf %15, %85 : vector<8x32xf32>
    %87 = vector.broadcast %78 : vector<8x1xf32> to vector<8x32xf32>
    %88 = arith.mulf %82, %87 : vector<8x32xf32>
    %89 = arith.index_cast %55 : i32 to index
    %c32 = arith.constant 32 : index
    %90 = vector.load %arg8[%89, %c32] : memref<64x64xf32, #tpu.memory_space<vmem>>, vector<8x32xf32>
    tpu.vector_store %arg8[%89, %c32], %88 {strides = array<i32>} : memref<64x64xf32, #tpu.memory_space<vmem>>, vector<8x32xf32>,
    %c1_i32 = arith.constant 1 : i32
    %c8_i32_26 = arith.constant 8 : i32
    %91 = arith.muli %c1_i32, %c8_i32_26 : i32
    %92 = tpu.assume_multiple %91, 8 : i32
    %93 = arith.index_cast %92 : i32 to index
    %c0_27 = arith.constant 0 : index
    %94 = vector.load %arg9[%93, %c0_27] : memref<64x256xf32, #tpu.memory_space<vmem>>, vector<8x128xf32>
    %95 = arith.truncf %44 : vector<8x32xf32> to vector<8x32xbf16>
    %cst_28 = arith.constant dense<0.000000e+00> : vector<8x128xf32>
    %96 = tpu.matmul %95, %13, %cst_28 {dimension_numbers = #tpu.dot_dimension_numbers<[1], [0], [0], [1], [0, 0, 1, 1], [], []>} : vector<8x32xbf16>, vector<32x128xbf16>, vector<8x128xf32> -> vector<8x128xf32>
    %97 = arith.addf %94, %96 : vector<8x128xf32>
    %98 = vector.extract_strided_slice %97 {offsets = [0, 0], sizes = [8, 96], strides = [1, 1]} : vector<8x128xf32> to vector<8x96xf32>
    %99 = arith.negf %98 : vector<8x96xf32>
    %100 = math.exp %99 : vector<8x96xf32>
    %cst_29 = arith.constant 1.000000e+00 : f32
    %101 = vector.broadcast %cst_29 : f32 to vector<8x96xf32>
    %102 = arith.addf %101, %100 : vector<8x96xf32>
    %103 = arith.divf %101, %102 : vector<8x96xf32>
    %104 = vector.extract_strided_slice %97 {offsets = [0, 96], sizes = [8, 32], strides = [1, 1]} : vector<8x128xf32> to vector<8x32xf32>
    %105 = math.tanh %104 : vector<8x32xf32>
    %106 = vector.extract_strided_slice %103 {offsets = [0, 32], sizes = [8, 32], strides = [1, 1]} : vector<8x96xf32> to vector<8x32xf32>
    %107 = arith.mulf %106, %48 : vector<8x32xf32>
    %108 = vector.extract_strided_slice %103 {offsets = [0, 0], sizes = [8, 32], strides = [1, 1]} : vector<8x96xf32> to vector<8x32xf32>
    %109 = arith.mulf %108, %105 : vector<8x32xf32>
    %110 = arith.addf %107, %109 : vector<8x32xf32>
    %111 = vector.extract_strided_slice %103 {offsets = [0, 64], sizes = [8, 32], strides = [1, 1]} : vector<8x96xf32> to vector<8x32xf32>
    %112 = math.tanh %110 : vector<8x32xf32>
    %113 = arith.mulf %111, %112 : vector<8x32xf32>
    %114 = arith.index_cast %92 : i32 to index
    %c0_30 = arith.constant 0 : index
    %115 = vector.load %arg1[%114, %c0_30] : memref<64x1xf32, #tpu.memory_space<vmem>>, vector<8x1xf32>
    %116 = arith.subf %113, %44 : vector<8x32xf32>
    %117 = vector.broadcast %115 : vector<8x1xf32> to vector<8x32xf32>
    %118 = arith.mulf %117, %116 : vector<8x32xf32>
    %119 = arith.addf %44, %118 : vector<8x32xf32>
    %120 = arith.subf %110, %48 : vector<8x32xf32>
    %121 = vector.broadcast %115 : vector<8x1xf32> to vector<8x32xf32>
    %122 = arith.mulf %121, %120 : vector<8x32xf32>
    %123 = arith.addf %48, %122 : vector<8x32xf32>
    %124 = vector.broadcast %115 : vector<8x1xf32> to vector<8x32xf32>
    %125 = arith.mulf %119, %124 : vector<8x32xf32>
    %126 = arith.index_cast %92 : i32 to index
    %c0_31 = arith.constant 0 : index
    %127 = vector.load %arg8[%126, %c0_31] : memref<64x64xf32, #tpu.memory_space<vmem>>, vector<8x32xf32>
    tpu.vector_store %arg8[%126, %c0_31], %125 {strides = array<i32>} : memref<64x64xf32, #tpu.memory_space<vmem>>, vector<8x32xf32>,
    %c7_i32_32 = arith.constant 7 : i32
    %128 = arith.subi %c7_i32_32, %c1_i32 : i32
    %c8_i32_33 = arith.constant 8 : i32
    %129 = arith.muli %128, %c8_i32_33 : i32
    %130 = tpu.assume_multiple %129, 8 : i32
    %131 = arith.index_cast %130 : i32 to index
    %c128_34 = arith.constant 128 : index
    %132 = vector.load %arg9[%131, %c128_34] : memref<64x256xf32, #tpu.memory_space<vmem>>, vector<8x128xf32>
    %133 = arith.truncf %82 : vector<8x32xf32> to vector<8x32xbf16>
    %cst_35 = arith.constant dense<0.000000e+00> : vector<8x128xf32>
    %134 = tpu.matmul %133, %14, %cst_35 {dimension_numbers = #tpu.dot_dimension_numbers<[1], [0], [0], [1], [0, 0, 1, 1], [], []>} : vector<8x32xbf16>, vector<32x128xbf16>, vector<8x128xf32> -> vector<8x128xf32>
    %135 = arith.addf %132, %134 : vector<8x128xf32>
    %136 = vector.extract_strided_slice %135 {offsets = [0, 0], sizes = [8, 96], strides = [1, 1]} : vector<8x128xf32> to vector<8x96xf32>
    %137 = arith.negf %136 : vector<8x96xf32>
    %138 = math.exp %137 : vector<8x96xf32>
    %cst_36 = arith.constant 1.000000e+00 : f32
    %139 = vector.broadcast %cst_36 : f32 to vector<8x96xf32>
    %140 = arith.addf %139, %138 : vector<8x96xf32>
    %141 = arith.divf %139, %140 : vector<8x96xf32>
    %142 = vector.extract_strided_slice %135 {offsets = [0, 96], sizes = [8, 32], strides = [1, 1]} : vector<8x128xf32> to vector<8x32xf32>
    %143 = math.tanh %142 : vector<8x32xf32>
    %144 = vector.extract_strided_slice %141 {offsets = [0, 32], sizes = [8, 32], strides = [1, 1]} : vector<8x96xf32> to vector<8x32xf32>
    %145 = arith.mulf %144, %86 : vector<8x32xf32>
    %146 = vector.extract_strided_slice %141 {offsets = [0, 0], sizes = [8, 32], strides = [1, 1]} : vector<8x96xf32> to vector<8x32xf32>
    %147 = arith.mulf %146, %143 : vector<8x32xf32>
    %148 = arith.addf %145, %147 : vector<8x32xf32>
    %149 = vector.extract_strided_slice %141 {offsets = [0, 64], sizes = [8, 32], strides = [1, 1]} : vector<8x96xf32> to vector<8x32xf32>
    %150 = math.tanh %148 : vector<8x32xf32>
    %151 = arith.mulf %149, %150 : vector<8x32xf32>
    %152 = arith.index_cast %130 : i32 to index
    %c0_37 = arith.constant 0 : index
    %153 = vector.load %arg1[%152, %c0_37] : memref<64x1xf32, #tpu.memory_space<vmem>>, vector<8x1xf32>
    %154 = arith.subf %151, %82 : vector<8x32xf32>
    %155 = vector.broadcast %153 : vector<8x1xf32> to vector<8x32xf32>
    %156 = arith.mulf %155, %154 : vector<8x32xf32>
    %157 = arith.addf %82, %156 : vector<8x32xf32>
    %158 = arith.subf %148, %86 : vector<8x32xf32>
    %159 = vector.broadcast %153 : vector<8x1xf32> to vector<8x32xf32>
    %160 = arith.mulf %159, %158 : vector<8x32xf32>
    %161 = arith.addf %86, %160 : vector<8x32xf32>
    %162 = vector.broadcast %153 : vector<8x1xf32> to vector<8x32xf32>
    %163 = arith.mulf %157, %162 : vector<8x32xf32>
    %164 = arith.index_cast %130 : i32 to index
    %c32_38 = arith.constant 32 : index
    %165 = vector.load %arg8[%164, %c32_38] : memref<64x64xf32, #tpu.memory_space<vmem>>, vector<8x32xf32>
    tpu.vector_store %arg8[%164, %c32_38], %163 {strides = array<i32>} : memref<64x64xf32, #tpu.memory_space<vmem>>, vector<8x32xf32>,
    %c2_i32 = arith.constant 2 : i32
    %c8_i32_39 = arith.constant 8 : i32
    %166 = arith.muli %c2_i32, %c8_i32_39 : i32
    %167 = tpu.assume_multiple %166, 8 : i32
    %168 = arith.index_cast %167 : i32 to index
    %c0_40 = arith.constant 0 : index
    %169 = vector.load %arg9[%168, %c0_40] : memref<64x256xf32, #tpu.memory_space<vmem>>, vector<8x128xf32>
    %170 = arith.truncf %119 : vector<8x32xf32> to vector<8x32xbf16>
    %cst_41 = arith.constant dense<0.000000e+00> : vector<8x128xf32>
    %171 = tpu.matmul %170, %13, %cst_41 {dimension_numbers = #tpu.dot_dimension_numbers<[1], [0], [0], [1], [0, 0, 1, 1], [], []>} : vector<8x32xbf16>, vector<32x128xbf16>, vector<8x128xf32> -> vector<8x128xf32>
    %172 = arith.addf %169, %171 : vector<8x128xf32>
    %173 = vector.extract_strided_slice %172 {offsets = [0, 0], sizes = [8, 96], strides = [1, 1]} : vector<8x128xf32> to vector<8x96xf32>
    %174 = arith.negf %173 : vector<8x96xf32>
    %175 = math.exp %174 : vector<8x96xf32>
    %cst_42 = arith.constant 1.000000e+00 : f32
    %176 = vector.broadcast %cst_42 : f32 to vector<8x96xf32>
    %177 = arith.addf %176, %175 : vector<8x96xf32>
    %178 = arith.divf %176, %177 : vector<8x96xf32>
    %179 = vector.extract_strided_slice %172 {offsets = [0, 96], sizes = [8, 32], strides = [1, 1]} : vector<8x128xf32> to vector<8x32xf32>
    %180 = math.tanh %179 : vector<8x32xf32>
    %181 = vector.extract_strided_slice %178 {offsets = [0, 32], sizes = [8, 32], strides = [1, 1]} : vector<8x96xf32> to vector<8x32xf32>
    %182 = arith.mulf %181, %123 : vector<8x32xf32>
    %183 = vector.extract_strided_slice %178 {offsets = [0, 0], sizes = [8, 32], strides = [1, 1]} : vector<8x96xf32> to vector<8x32xf32>
    %184 = arith.mulf %183, %180 : vector<8x32xf32>
    %185 = arith.addf %182, %184 : vector<8x32xf32>
    %186 = vector.extract_strided_slice %178 {offsets = [0, 64], sizes = [8, 32], strides = [1, 1]} : vector<8x96xf32> to vector<8x32xf32>
    %187 = math.tanh %185 : vector<8x32xf32>
    %188 = arith.mulf %186, %187 : vector<8x32xf32>
    %189 = arith.index_cast %167 : i32 to index
    %c0_43 = arith.constant 0 : index
    %190 = vector.load %arg1[%189, %c0_43] : memref<64x1xf32, #tpu.memory_space<vmem>>, vector<8x1xf32>
    %191 = arith.subf %188, %119 : vector<8x32xf32>
    %192 = vector.broadcast %190 : vector<8x1xf32> to vector<8x32xf32>
    %193 = arith.mulf %192, %191 : vector<8x32xf32>
    %194 = arith.addf %119, %193 : vector<8x32xf32>
    %195 = arith.subf %185, %123 : vector<8x32xf32>
    %196 = vector.broadcast %190 : vector<8x1xf32> to vector<8x32xf32>
    %197 = arith.mulf %196, %195 : vector<8x32xf32>
    %198 = arith.addf %123, %197 : vector<8x32xf32>
    %199 = vector.broadcast %190 : vector<8x1xf32> to vector<8x32xf32>
    %200 = arith.mulf %194, %199 : vector<8x32xf32>
    %201 = arith.index_cast %167 : i32 to index
    %c0_44 = arith.constant 0 : index
    %202 = vector.load %arg8[%201, %c0_44] : memref<64x64xf32, #tpu.memory_space<vmem>>, vector<8x32xf32>
    tpu.vector_store %arg8[%201, %c0_44], %200 {strides = array<i32>} : memref<64x64xf32, #tpu.memory_space<vmem>>, vector<8x32xf32>,
    %c7_i32_45 = arith.constant 7 : i32
    %203 = arith.subi %c7_i32_45, %c2_i32 : i32
    %c8_i32_46 = arith.constant 8 : i32
    %204 = arith.muli %203, %c8_i32_46 : i32
    %205 = tpu.assume_multiple %204, 8 : i32
    %206 = arith.index_cast %205 : i32 to index
    %c128_47 = arith.constant 128 : index
    %207 = vector.load %arg9[%206, %c128_47] : memref<64x256xf32, #tpu.memory_space<vmem>>, vector<8x128xf32>
    %208 = arith.truncf %157 : vector<8x32xf32> to vector<8x32xbf16>
    %cst_48 = arith.constant dense<0.000000e+00> : vector<8x128xf32>
    %209 = tpu.matmul %208, %14, %cst_48 {dimension_numbers = #tpu.dot_dimension_numbers<[1], [0], [0], [1], [0, 0, 1, 1], [], []>} : vector<8x32xbf16>, vector<32x128xbf16>, vector<8x128xf32> -> vector<8x128xf32>
    %210 = arith.addf %207, %209 : vector<8x128xf32>
    %211 = vector.extract_strided_slice %210 {offsets = [0, 0], sizes = [8, 96], strides = [1, 1]} : vector<8x128xf32> to vector<8x96xf32>
    %212 = arith.negf %211 : vector<8x96xf32>
    %213 = math.exp %212 : vector<8x96xf32>
    %cst_49 = arith.constant 1.000000e+00 : f32
    %214 = vector.broadcast %cst_49 : f32 to vector<8x96xf32>
    %215 = arith.addf %214, %213 : vector<8x96xf32>
    %216 = arith.divf %214, %215 : vector<8x96xf32>
    %217 = vector.extract_strided_slice %210 {offsets = [0, 96], sizes = [8, 32], strides = [1, 1]} : vector<8x128xf32> to vector<8x32xf32>
    %218 = math.tanh %217 : vector<8x32xf32>
    %219 = vector.extract_strided_slice %216 {offsets = [0, 32], sizes = [8, 32], strides = [1, 1]} : vector<8x96xf32> to vector<8x32xf32>
    %220 = arith.mulf %219, %161 : vector<8x32xf32>
    %221 = vector.extract_strided_slice %216 {offsets = [0, 0], sizes = [8, 32], strides = [1, 1]} : vector<8x96xf32> to vector<8x32xf32>
    %222 = arith.mulf %221, %218 : vector<8x32xf32>
    %223 = arith.addf %220, %222 : vector<8x32xf32>
    %224 = vector.extract_strided_slice %216 {offsets = [0, 64], sizes = [8, 32], strides = [1, 1]} : vector<8x96xf32> to vector<8x32xf32>
    %225 = math.tanh %223 : vector<8x32xf32>
    %226 = arith.mulf %224, %225 : vector<8x32xf32>
    %227 = arith.index_cast %205 : i32 to index
    %c0_50 = arith.constant 0 : index
    %228 = vector.load %arg1[%227, %c0_50] : memref<64x1xf32, #tpu.memory_space<vmem>>, vector<8x1xf32>
    %229 = arith.subf %226, %157 : vector<8x32xf32>
    %230 = vector.broadcast %228 : vector<8x1xf32> to vector<8x32xf32>
    %231 = arith.mulf %230, %229 : vector<8x32xf32>
    %232 = arith.addf %157, %231 : vector<8x32xf32>
    %233 = arith.subf %223, %161 : vector<8x32xf32>
    %234 = vector.broadcast %228 : vector<8x1xf32> to vector<8x32xf32>
    %235 = arith.mulf %234, %233 : vector<8x32xf32>
    %236 = arith.addf %161, %235 : vector<8x32xf32>
    %237 = vector.broadcast %228 : vector<8x1xf32> to vector<8x32xf32>
    %238 = arith.mulf %232, %237 : vector<8x32xf32>
    %239 = arith.index_cast %205 : i32 to index
    %c32_51 = arith.constant 32 : index
    %240 = vector.load %arg8[%239, %c32_51] : memref<64x64xf32, #tpu.memory_space<vmem>>, vector<8x32xf32>
    tpu.vector_store %arg8[%239, %c32_51], %238 {strides = array<i32>} : memref<64x64xf32, #tpu.memory_space<vmem>>, vector<8x32xf32>,
    %c3_i32 = arith.constant 3 : i32
    %c8_i32_52 = arith.constant 8 : i32
    %241 = arith.muli %c3_i32, %c8_i32_52 : i32
    %242 = tpu.assume_multiple %241, 8 : i32
    %243 = arith.index_cast %242 : i32 to index
    %c0_53 = arith.constant 0 : index
    %244 = vector.load %arg9[%243, %c0_53] : memref<64x256xf32, #tpu.memory_space<vmem>>, vector<8x128xf32>
    %245 = arith.truncf %194 : vector<8x32xf32> to vector<8x32xbf16>
    %cst_54 = arith.constant dense<0.000000e+00> : vector<8x128xf32>
    %246 = tpu.matmul %245, %13, %cst_54 {dimension_numbers = #tpu.dot_dimension_numbers<[1], [0], [0], [1], [0, 0, 1, 1], [], []>} : vector<8x32xbf16>, vector<32x128xbf16>, vector<8x128xf32> -> vector<8x128xf32>
    %247 = arith.addf %244, %246 : vector<8x128xf32>
    %248 = vector.extract_strided_slice %247 {offsets = [0, 0], sizes = [8, 96], strides = [1, 1]} : vector<8x128xf32> to vector<8x96xf32>
    %249 = arith.negf %248 : vector<8x96xf32>
    %250 = math.exp %249 : vector<8x96xf32>
    %cst_55 = arith.constant 1.000000e+00 : f32
    %251 = vector.broadcast %cst_55 : f32 to vector<8x96xf32>
    %252 = arith.addf %251, %250 : vector<8x96xf32>
    %253 = arith.divf %251, %252 : vector<8x96xf32>
    %254 = vector.extract_strided_slice %247 {offsets = [0, 96], sizes = [8, 32], strides = [1, 1]} : vector<8x128xf32> to vector<8x32xf32>
    %255 = math.tanh %254 : vector<8x32xf32>
    %256 = vector.extract_strided_slice %253 {offsets = [0, 32], sizes = [8, 32], strides = [1, 1]} : vector<8x96xf32> to vector<8x32xf32>
    %257 = arith.mulf %256, %198 : vector<8x32xf32>
    %258 = vector.extract_strided_slice %253 {offsets = [0, 0], sizes = [8, 32], strides = [1, 1]} : vector<8x96xf32> to vector<8x32xf32>
    %259 = arith.mulf %258, %255 : vector<8x32xf32>
    %260 = arith.addf %257, %259 : vector<8x32xf32>
    %261 = vector.extract_strided_slice %253 {offsets = [0, 64], sizes = [8, 32], strides = [1, 1]} : vector<8x96xf32> to vector<8x32xf32>
    %262 = math.tanh %260 : vector<8x32xf32>
    %263 = arith.mulf %261, %262 : vector<8x32xf32>
    %264 = arith.index_cast %242 : i32 to index
    %c0_56 = arith.constant 0 : index
    %265 = vector.load %arg1[%264, %c0_56] : memref<64x1xf32, #tpu.memory_space<vmem>>, vector<8x1xf32>
    %266 = arith.subf %263, %194 : vector<8x32xf32>
    %267 = vector.broadcast %265 : vector<8x1xf32> to vector<8x32xf32>
    %268 = arith.mulf %267, %266 : vector<8x32xf32>
    %269 = arith.addf %194, %268 : vector<8x32xf32>
    %270 = arith.subf %260, %198 : vector<8x32xf32>
    %271 = vector.broadcast %265 : vector<8x1xf32> to vector<8x32xf32>
    %272 = arith.mulf %271, %270 : vector<8x32xf32>
    %273 = arith.addf %198, %272 : vector<8x32xf32>
    %274 = vector.broadcast %265 : vector<8x1xf32> to vector<8x32xf32>
    %275 = arith.mulf %269, %274 : vector<8x32xf32>
    %276 = arith.index_cast %242 : i32 to index
    %c0_57 = arith.constant 0 : index
    %277 = vector.load %arg8[%276, %c0_57] : memref<64x64xf32, #tpu.memory_space<vmem>>, vector<8x32xf32>
    tpu.vector_store %arg8[%276, %c0_57], %275 {strides = array<i32>} : memref<64x64xf32, #tpu.memory_space<vmem>>, vector<8x32xf32>,
    %c7_i32_58 = arith.constant 7 : i32
    %278 = arith.subi %c7_i32_58, %c3_i32 : i32
    %c8_i32_59 = arith.constant 8 : i32
    %279 = arith.muli %278, %c8_i32_59 : i32
    %280 = tpu.assume_multiple %279, 8 : i32
    %281 = arith.index_cast %280 : i32 to index
    %c128_60 = arith.constant 128 : index
    %282 = vector.load %arg9[%281, %c128_60] : memref<64x256xf32, #tpu.memory_space<vmem>>, vector<8x128xf32>
    %283 = arith.truncf %232 : vector<8x32xf32> to vector<8x32xbf16>
    %cst_61 = arith.constant dense<0.000000e+00> : vector<8x128xf32>
    %284 = tpu.matmul %283, %14, %cst_61 {dimension_numbers = #tpu.dot_dimension_numbers<[1], [0], [0], [1], [0, 0, 1, 1], [], []>} : vector<8x32xbf16>, vector<32x128xbf16>, vector<8x128xf32> -> vector<8x128xf32>
    %285 = arith.addf %282, %284 : vector<8x128xf32>
    %286 = vector.extract_strided_slice %285 {offsets = [0, 0], sizes = [8, 96], strides = [1, 1]} : vector<8x128xf32> to vector<8x96xf32>
    %287 = arith.negf %286 : vector<8x96xf32>
    %288 = math.exp %287 : vector<8x96xf32>
    %cst_62 = arith.constant 1.000000e+00 : f32
    %289 = vector.broadcast %cst_62 : f32 to vector<8x96xf32>
    %290 = arith.addf %289, %288 : vector<8x96xf32>
    %291 = arith.divf %289, %290 : vector<8x96xf32>
    %292 = vector.extract_strided_slice %285 {offsets = [0, 96], sizes = [8, 32], strides = [1, 1]} : vector<8x128xf32> to vector<8x32xf32>
    %293 = math.tanh %292 : vector<8x32xf32>
    %294 = vector.extract_strided_slice %291 {offsets = [0, 32], sizes = [8, 32], strides = [1, 1]} : vector<8x96xf32> to vector<8x32xf32>
    %295 = arith.mulf %294, %236 : vector<8x32xf32>
    %296 = vector.extract_strided_slice %291 {offsets = [0, 0], sizes = [8, 32], strides = [1, 1]} : vector<8x96xf32> to vector<8x32xf32>
    %297 = arith.mulf %296, %293 : vector<8x32xf32>
    %298 = arith.addf %295, %297 : vector<8x32xf32>
    %299 = vector.extract_strided_slice %291 {offsets = [0, 64], sizes = [8, 32], strides = [1, 1]} : vector<8x96xf32> to vector<8x32xf32>
    %300 = math.tanh %298 : vector<8x32xf32>
    %301 = arith.mulf %299, %300 : vector<8x32xf32>
    %302 = arith.index_cast %280 : i32 to index
    %c0_63 = arith.constant 0 : index
    %303 = vector.load %arg1[%302, %c0_63] : memref<64x1xf32, #tpu.memory_space<vmem>>, vector<8x1xf32>
    %304 = arith.subf %301, %232 : vector<8x32xf32>
    %305 = vector.broadcast %303 : vector<8x1xf32> to vector<8x32xf32>
    %306 = arith.mulf %305, %304 : vector<8x32xf32>
    %307 = arith.addf %232, %306 : vector<8x32xf32>
    %308 = arith.subf %298, %236 : vector<8x32xf32>
    %309 = vector.broadcast %303 : vector<8x1xf32> to vector<8x32xf32>
    %310 = arith.mulf %309, %308 : vector<8x32xf32>
    %311 = arith.addf %236, %310 : vector<8x32xf32>
    %312 = vector.broadcast %303 : vector<8x1xf32> to vector<8x32xf32>
    %313 = arith.mulf %307, %312 : vector<8x32xf32>
    %314 = arith.index_cast %280 : i32 to index
    %c32_64 = arith.constant 32 : index
    %315 = vector.load %arg8[%314, %c32_64] : memref<64x64xf32, #tpu.memory_space<vmem>>, vector<8x32xf32>
    tpu.vector_store %arg8[%314, %c32_64], %313 {strides = array<i32>} : memref<64x64xf32, #tpu.memory_space<vmem>>, vector<8x32xf32>,
    %c4_i32 = arith.constant 4 : i32
    %c8_i32_65 = arith.constant 8 : i32
    %316 = arith.muli %c4_i32, %c8_i32_65 : i32
    %317 = tpu.assume_multiple %316, 8 : i32
    %318 = arith.index_cast %317 : i32 to index
    %c0_66 = arith.constant 0 : index
    %319 = vector.load %arg9[%318, %c0_66] : memref<64x256xf32, #tpu.memory_space<vmem>>, vector<8x128xf32>
    %320 = arith.truncf %269 : vector<8x32xf32> to vector<8x32xbf16>
    %cst_67 = arith.constant dense<0.000000e+00> : vector<8x128xf32>
    %321 = tpu.matmul %320, %13, %cst_67 {dimension_numbers = #tpu.dot_dimension_numbers<[1], [0], [0], [1], [0, 0, 1, 1], [], []>} : vector<8x32xbf16>, vector<32x128xbf16>, vector<8x128xf32> -> vector<8x128xf32>
    %322 = arith.addf %319, %321 : vector<8x128xf32>
    %323 = vector.extract_strided_slice %322 {offsets = [0, 0], sizes = [8, 96], strides = [1, 1]} : vector<8x128xf32> to vector<8x96xf32>
    %324 = arith.negf %323 : vector<8x96xf32>
    %325 = math.exp %324 : vector<8x96xf32>
    %cst_68 = arith.constant 1.000000e+00 : f32
    %326 = vector.broadcast %cst_68 : f32 to vector<8x96xf32>
    %327 = arith.addf %326, %325 : vector<8x96xf32>
    %328 = arith.divf %326, %327 : vector<8x96xf32>
    %329 = vector.extract_strided_slice %322 {offsets = [0, 96], sizes = [8, 32], strides = [1, 1]} : vector<8x128xf32> to vector<8x32xf32>
    %330 = math.tanh %329 : vector<8x32xf32>
    %331 = vector.extract_strided_slice %328 {offsets = [0, 32], sizes = [8, 32], strides = [1, 1]} : vector<8x96xf32> to vector<8x32xf32>
    %332 = arith.mulf %331, %273 : vector<8x32xf32>
    %333 = vector.extract_strided_slice %328 {offsets = [0, 0], sizes = [8, 32], strides = [1, 1]} : vector<8x96xf32> to vector<8x32xf32>
    %334 = arith.mulf %333, %330 : vector<8x32xf32>
    %335 = arith.addf %332, %334 : vector<8x32xf32>
    %336 = vector.extract_strided_slice %328 {offsets = [0, 64], sizes = [8, 32], strides = [1, 1]} : vector<8x96xf32> to vector<8x32xf32>
    %337 = math.tanh %335 : vector<8x32xf32>
    %338 = arith.mulf %336, %337 : vector<8x32xf32>
    %339 = arith.index_cast %317 : i32 to index
    %c0_69 = arith.constant 0 : index
    %340 = vector.load %arg1[%339, %c0_69] : memref<64x1xf32, #tpu.memory_space<vmem>>, vector<8x1xf32>
    %341 = arith.subf %338, %269 : vector<8x32xf32>
    %342 = vector.broadcast %340 : vector<8x1xf32> to vector<8x32xf32>
    %343 = arith.mulf %342, %341 : vector<8x32xf32>
    %344 = arith.addf %269, %343 : vector<8x32xf32>
    %345 = arith.subf %335, %273 : vector<8x32xf32>
    %346 = vector.broadcast %340 : vector<8x1xf32> to vector<8x32xf32>
    %347 = arith.mulf %346, %345 : vector<8x32xf32>
    %348 = arith.addf %273, %347 : vector<8x32xf32>
    %349 = vector.broadcast %340 : vector<8x1xf32> to vector<8x32xf32>
    %350 = arith.mulf %344, %349 : vector<8x32xf32>
    %351 = arith.index_cast %317 : i32 to index
    %c0_70 = arith.constant 0 : index
    %352 = vector.load %arg8[%351, %c0_70] : memref<64x64xf32, #tpu.memory_space<vmem>>, vector<8x32xf32>
    tpu.vector_store %arg8[%351, %c0_70], %350 {strides = array<i32>} : memref<64x64xf32, #tpu.memory_space<vmem>>, vector<8x32xf32>,
    %c7_i32_71 = arith.constant 7 : i32
    %353 = arith.subi %c7_i32_71, %c4_i32 : i32
    %c8_i32_72 = arith.constant 8 : i32
    %354 = arith.muli %353, %c8_i32_72 : i32
    %355 = tpu.assume_multiple %354, 8 : i32
    %356 = arith.index_cast %355 : i32 to index
    %c128_73 = arith.constant 128 : index
    %357 = vector.load %arg9[%356, %c128_73] : memref<64x256xf32, #tpu.memory_space<vmem>>, vector<8x128xf32>
    %358 = arith.truncf %307 : vector<8x32xf32> to vector<8x32xbf16>
    %cst_74 = arith.constant dense<0.000000e+00> : vector<8x128xf32>
    %359 = tpu.matmul %358, %14, %cst_74 {dimension_numbers = #tpu.dot_dimension_numbers<[1], [0], [0], [1], [0, 0, 1, 1], [], []>} : vector<8x32xbf16>, vector<32x128xbf16>, vector<8x128xf32> -> vector<8x128xf32>
    %360 = arith.addf %357, %359 : vector<8x128xf32>
    %361 = vector.extract_strided_slice %360 {offsets = [0, 0], sizes = [8, 96], strides = [1, 1]} : vector<8x128xf32> to vector<8x96xf32>
    %362 = arith.negf %361 : vector<8x96xf32>
    %363 = math.exp %362 : vector<8x96xf32>
    %cst_75 = arith.constant 1.000000e+00 : f32
    %364 = vector.broadcast %cst_75 : f32 to vector<8x96xf32>
    %365 = arith.addf %364, %363 : vector<8x96xf32>
    %366 = arith.divf %364, %365 : vector<8x96xf32>
    %367 = vector.extract_strided_slice %360 {offsets = [0, 96], sizes = [8, 32], strides = [1, 1]} : vector<8x128xf32> to vector<8x32xf32>
    %368 = math.tanh %367 : vector<8x32xf32>
    %369 = vector.extract_strided_slice %366 {offsets = [0, 32], sizes = [8, 32], strides = [1, 1]} : vector<8x96xf32> to vector<8x32xf32>
    %370 = arith.mulf %369, %311 : vector<8x32xf32>
    %371 = vector.extract_strided_slice %366 {offsets = [0, 0], sizes = [8, 32], strides = [1, 1]} : vector<8x96xf32> to vector<8x32xf32>
    %372 = arith.mulf %371, %368 : vector<8x32xf32>
    %373 = arith.addf %370, %372 : vector<8x32xf32>
    %374 = vector.extract_strided_slice %366 {offsets = [0, 64], sizes = [8, 32], strides = [1, 1]} : vector<8x96xf32> to vector<8x32xf32>
    %375 = math.tanh %373 : vector<8x32xf32>
    %376 = arith.mulf %374, %375 : vector<8x32xf32>
    %377 = arith.index_cast %355 : i32 to index
    %c0_76 = arith.constant 0 : index
    %378 = vector.load %arg1[%377, %c0_76] : memref<64x1xf32, #tpu.memory_space<vmem>>, vector<8x1xf32>
    %379 = arith.subf %376, %307 : vector<8x32xf32>
    %380 = vector.broadcast %378 : vector<8x1xf32> to vector<8x32xf32>
    %381 = arith.mulf %380, %379 : vector<8x32xf32>
    %382 = arith.addf %307, %381 : vector<8x32xf32>
    %383 = arith.subf %373, %311 : vector<8x32xf32>
    %384 = vector.broadcast %378 : vector<8x1xf32> to vector<8x32xf32>
    %385 = arith.mulf %384, %383 : vector<8x32xf32>
    %386 = arith.addf %311, %385 : vector<8x32xf32>
    %387 = vector.broadcast %378 : vector<8x1xf32> to vector<8x32xf32>
    %388 = arith.mulf %382, %387 : vector<8x32xf32>
    %389 = arith.index_cast %355 : i32 to index
    %c32_77 = arith.constant 32 : index
    %390 = vector.load %arg8[%389, %c32_77] : memref<64x64xf32, #tpu.memory_space<vmem>>, vector<8x32xf32>
    tpu.vector_store %arg8[%389, %c32_77], %388 {strides = array<i32>} : memref<64x64xf32, #tpu.memory_space<vmem>>, vector<8x32xf32>,
    %c5_i32 = arith.constant 5 : i32
    %c8_i32_78 = arith.constant 8 : i32
    %391 = arith.muli %c5_i32, %c8_i32_78 : i32
    %392 = tpu.assume_multiple %391, 8 : i32
    %393 = arith.index_cast %392 : i32 to index
    %c0_79 = arith.constant 0 : index
    %394 = vector.load %arg9[%393, %c0_79] : memref<64x256xf32, #tpu.memory_space<vmem>>, vector<8x128xf32>
    %395 = arith.truncf %344 : vector<8x32xf32> to vector<8x32xbf16>
    %cst_80 = arith.constant dense<0.000000e+00> : vector<8x128xf32>
    %396 = tpu.matmul %395, %13, %cst_80 {dimension_numbers = #tpu.dot_dimension_numbers<[1], [0], [0], [1], [0, 0, 1, 1], [], []>} : vector<8x32xbf16>, vector<32x128xbf16>, vector<8x128xf32> -> vector<8x128xf32>
    %397 = arith.addf %394, %396 : vector<8x128xf32>
    %398 = vector.extract_strided_slice %397 {offsets = [0, 0], sizes = [8, 96], strides = [1, 1]} : vector<8x128xf32> to vector<8x96xf32>
    %399 = arith.negf %398 : vector<8x96xf32>
    %400 = math.exp %399 : vector<8x96xf32>
    %cst_81 = arith.constant 1.000000e+00 : f32
    %401 = vector.broadcast %cst_81 : f32 to vector<8x96xf32>
    %402 = arith.addf %401, %400 : vector<8x96xf32>
    %403 = arith.divf %401, %402 : vector<8x96xf32>
    %404 = vector.extract_strided_slice %397 {offsets = [0, 96], sizes = [8, 32], strides = [1, 1]} : vector<8x128xf32> to vector<8x32xf32>
    %405 = math.tanh %404 : vector<8x32xf32>
    %406 = vector.extract_strided_slice %403 {offsets = [0, 32], sizes = [8, 32], strides = [1, 1]} : vector<8x96xf32> to vector<8x32xf32>
    %407 = arith.mulf %406, %348 : vector<8x32xf32>
    %408 = vector.extract_strided_slice %403 {offsets = [0, 0], sizes = [8, 32], strides = [1, 1]} : vector<8x96xf32> to vector<8x32xf32>
    %409 = arith.mulf %408, %405 : vector<8x32xf32>
    %410 = arith.addf %407, %409 : vector<8x32xf32>
    %411 = vector.extract_strided_slice %403 {offsets = [0, 64], sizes = [8, 32], strides = [1, 1]} : vector<8x96xf32> to vector<8x32xf32>
    %412 = math.tanh %410 : vector<8x32xf32>
    %413 = arith.mulf %411, %412 : vector<8x32xf32>
    %414 = arith.index_cast %392 : i32 to index
    %c0_82 = arith.constant 0 : index
    %415 = vector.load %arg1[%414, %c0_82] : memref<64x1xf32, #tpu.memory_space<vmem>>, vector<8x1xf32>
    %416 = arith.subf %413, %344 : vector<8x32xf32>
    %417 = vector.broadcast %415 : vector<8x1xf32> to vector<8x32xf32>
    %418 = arith.mulf %417, %416 : vector<8x32xf32>
    %419 = arith.addf %344, %418 : vector<8x32xf32>
    %420 = arith.subf %410, %348 : vector<8x32xf32>
    %421 = vector.broadcast %415 : vector<8x1xf32> to vector<8x32xf32>
    %422 = arith.mulf %421, %420 : vector<8x32xf32>
    %423 = arith.addf %348, %422 : vector<8x32xf32>
    %424 = vector.broadcast %415 : vector<8x1xf32> to vector<8x32xf32>
    %425 = arith.mulf %419, %424 : vector<8x32xf32>
    %426 = arith.index_cast %392 : i32 to index
    %c0_83 = arith.constant 0 : index
    %427 = vector.load %arg8[%426, %c0_83] : memref<64x64xf32, #tpu.memory_space<vmem>>, vector<8x32xf32>
    tpu.vector_store %arg8[%426, %c0_83], %425 {strides = array<i32>} : memref<64x64xf32, #tpu.memory_space<vmem>>, vector<8x32xf32>,
    %c7_i32_84 = arith.constant 7 : i32
    %428 = arith.subi %c7_i32_84, %c5_i32 : i32
    %c8_i32_85 = arith.constant 8 : i32
    %429 = arith.muli %428, %c8_i32_85 : i32
    %430 = tpu.assume_multiple %429, 8 : i32
    %431 = arith.index_cast %430 : i32 to index
    %c128_86 = arith.constant 128 : index
    %432 = vector.load %arg9[%431, %c128_86] : memref<64x256xf32, #tpu.memory_space<vmem>>, vector<8x128xf32>
    %433 = arith.truncf %382 : vector<8x32xf32> to vector<8x32xbf16>
    %cst_87 = arith.constant dense<0.000000e+00> : vector<8x128xf32>
    %434 = tpu.matmul %433, %14, %cst_87 {dimension_numbers = #tpu.dot_dimension_numbers<[1], [0], [0], [1], [0, 0, 1, 1], [], []>} : vector<8x32xbf16>, vector<32x128xbf16>, vector<8x128xf32> -> vector<8x128xf32>
    %435 = arith.addf %432, %434 : vector<8x128xf32>
    %436 = vector.extract_strided_slice %435 {offsets = [0, 0], sizes = [8, 96], strides = [1, 1]} : vector<8x128xf32> to vector<8x96xf32>
    %437 = arith.negf %436 : vector<8x96xf32>
    %438 = math.exp %437 : vector<8x96xf32>
    %cst_88 = arith.constant 1.000000e+00 : f32
    %439 = vector.broadcast %cst_88 : f32 to vector<8x96xf32>
    %440 = arith.addf %439, %438 : vector<8x96xf32>
    %441 = arith.divf %439, %440 : vector<8x96xf32>
    %442 = vector.extract_strided_slice %435 {offsets = [0, 96], sizes = [8, 32], strides = [1, 1]} : vector<8x128xf32> to vector<8x32xf32>
    %443 = math.tanh %442 : vector<8x32xf32>
    %444 = vector.extract_strided_slice %441 {offsets = [0, 32], sizes = [8, 32], strides = [1, 1]} : vector<8x96xf32> to vector<8x32xf32>
    %445 = arith.mulf %444, %386 : vector<8x32xf32>
    %446 = vector.extract_strided_slice %441 {offsets = [0, 0], sizes = [8, 32], strides = [1, 1]} : vector<8x96xf32> to vector<8x32xf32>
    %447 = arith.mulf %446, %443 : vector<8x32xf32>
    %448 = arith.addf %445, %447 : vector<8x32xf32>
    %449 = vector.extract_strided_slice %441 {offsets = [0, 64], sizes = [8, 32], strides = [1, 1]} : vector<8x96xf32> to vector<8x32xf32>
    %450 = math.tanh %448 : vector<8x32xf32>
    %451 = arith.mulf %449, %450 : vector<8x32xf32>
    %452 = arith.index_cast %430 : i32 to index
    %c0_89 = arith.constant 0 : index
    %453 = vector.load %arg1[%452, %c0_89] : memref<64x1xf32, #tpu.memory_space<vmem>>, vector<8x1xf32>
    %454 = arith.subf %451, %382 : vector<8x32xf32>
    %455 = vector.broadcast %453 : vector<8x1xf32> to vector<8x32xf32>
    %456 = arith.mulf %455, %454 : vector<8x32xf32>
    %457 = arith.addf %382, %456 : vector<8x32xf32>
    %458 = arith.subf %448, %386 : vector<8x32xf32>
    %459 = vector.broadcast %453 : vector<8x1xf32> to vector<8x32xf32>
    %460 = arith.mulf %459, %458 : vector<8x32xf32>
    %461 = arith.addf %386, %460 : vector<8x32xf32>
    %462 = vector.broadcast %453 : vector<8x1xf32> to vector<8x32xf32>
    %463 = arith.mulf %457, %462 : vector<8x32xf32>
    %464 = arith.index_cast %430 : i32 to index
    %c32_90 = arith.constant 32 : index
    %465 = vector.load %arg8[%464, %c32_90] : memref<64x64xf32, #tpu.memory_space<vmem>>, vector<8x32xf32>
    tpu.vector_store %arg8[%464, %c32_90], %463 {strides = array<i32>} : memref<64x64xf32, #tpu.memory_space<vmem>>, vector<8x32xf32>,
    %c6_i32 = arith.constant 6 : i32
    %c8_i32_91 = arith.constant 8 : i32
    %466 = arith.muli %c6_i32, %c8_i32_91 : i32
    %467 = tpu.assume_multiple %466, 8 : i32
    %468 = arith.index_cast %467 : i32 to index
    %c0_92 = arith.constant 0 : index
    %469 = vector.load %arg9[%468, %c0_92] : memref<64x256xf32, #tpu.memory_space<vmem>>, vector<8x128xf32>
    %470 = arith.truncf %419 : vector<8x32xf32> to vector<8x32xbf16>
    %cst_93 = arith.constant dense<0.000000e+00> : vector<8x128xf32>
    %471 = tpu.matmul %470, %13, %cst_93 {dimension_numbers = #tpu.dot_dimension_numbers<[1], [0], [0], [1], [0, 0, 1, 1], [], []>} : vector<8x32xbf16>, vector<32x128xbf16>, vector<8x128xf32> -> vector<8x128xf32>
    %472 = arith.addf %469, %471 : vector<8x128xf32>
    %473 = vector.extract_strided_slice %472 {offsets = [0, 0], sizes = [8, 96], strides = [1, 1]} : vector<8x128xf32> to vector<8x96xf32>
    %474 = arith.negf %473 : vector<8x96xf32>
    %475 = math.exp %474 : vector<8x96xf32>
    %cst_94 = arith.constant 1.000000e+00 : f32
    %476 = vector.broadcast %cst_94 : f32 to vector<8x96xf32>
    %477 = arith.addf %476, %475 : vector<8x96xf32>
    %478 = arith.divf %476, %477 : vector<8x96xf32>
    %479 = vector.extract_strided_slice %472 {offsets = [0, 96], sizes = [8, 32], strides = [1, 1]} : vector<8x128xf32> to vector<8x32xf32>
    %480 = math.tanh %479 : vector<8x32xf32>
    %481 = vector.extract_strided_slice %478 {offsets = [0, 32], sizes = [8, 32], strides = [1, 1]} : vector<8x96xf32> to vector<8x32xf32>
    %482 = arith.mulf %481, %423 : vector<8x32xf32>
    %483 = vector.extract_strided_slice %478 {offsets = [0, 0], sizes = [8, 32], strides = [1, 1]} : vector<8x96xf32> to vector<8x32xf32>
    %484 = arith.mulf %483, %480 : vector<8x32xf32>
    %485 = arith.addf %482, %484 : vector<8x32xf32>
    %486 = vector.extract_strided_slice %478 {offsets = [0, 64], sizes = [8, 32], strides = [1, 1]} : vector<8x96xf32> to vector<8x32xf32>
    %487 = math.tanh %485 : vector<8x32xf32>
    %488 = arith.mulf %486, %487 : vector<8x32xf32>
    %489 = arith.index_cast %467 : i32 to index
    %c0_95 = arith.constant 0 : index
    %490 = vector.load %arg1[%489, %c0_95] : memref<64x1xf32, #tpu.memory_space<vmem>>, vector<8x1xf32>
    %491 = arith.subf %488, %419 : vector<8x32xf32>
    %492 = vector.broadcast %490 : vector<8x1xf32> to vector<8x32xf32>
    %493 = arith.mulf %492, %491 : vector<8x32xf32>
    %494 = arith.addf %419, %493 : vector<8x32xf32>
    %495 = arith.subf %485, %423 : vector<8x32xf32>
    %496 = vector.broadcast %490 : vector<8x1xf32> to vector<8x32xf32>
    %497 = arith.mulf %496, %495 : vector<8x32xf32>
    %498 = arith.addf %423, %497 : vector<8x32xf32>
    %499 = vector.broadcast %490 : vector<8x1xf32> to vector<8x32xf32>
    %500 = arith.mulf %494, %499 : vector<8x32xf32>
    %501 = arith.index_cast %467 : i32 to index
    %c0_96 = arith.constant 0 : index
    %502 = vector.load %arg8[%501, %c0_96] : memref<64x64xf32, #tpu.memory_space<vmem>>, vector<8x32xf32>
    tpu.vector_store %arg8[%501, %c0_96], %500 {strides = array<i32>} : memref<64x64xf32, #tpu.memory_space<vmem>>, vector<8x32xf32>,
    %c7_i32_97 = arith.constant 7 : i32
    %503 = arith.subi %c7_i32_97, %c6_i32 : i32
    %c8_i32_98 = arith.constant 8 : i32
    %504 = arith.muli %503, %c8_i32_98 : i32
    %505 = tpu.assume_multiple %504, 8 : i32
    %506 = arith.index_cast %505 : i32 to index
    %c128_99 = arith.constant 128 : index
    %507 = vector.load %arg9[%506, %c128_99] : memref<64x256xf32, #tpu.memory_space<vmem>>, vector<8x128xf32>
    %508 = arith.truncf %457 : vector<8x32xf32> to vector<8x32xbf16>
    %cst_100 = arith.constant dense<0.000000e+00> : vector<8x128xf32>
    %509 = tpu.matmul %508, %14, %cst_100 {dimension_numbers = #tpu.dot_dimension_numbers<[1], [0], [0], [1], [0, 0, 1, 1], [], []>} : vector<8x32xbf16>, vector<32x128xbf16>, vector<8x128xf32> -> vector<8x128xf32>
    %510 = arith.addf %507, %509 : vector<8x128xf32>
    %511 = vector.extract_strided_slice %510 {offsets = [0, 0], sizes = [8, 96], strides = [1, 1]} : vector<8x128xf32> to vector<8x96xf32>
    %512 = arith.negf %511 : vector<8x96xf32>
    %513 = math.exp %512 : vector<8x96xf32>
    %cst_101 = arith.constant 1.000000e+00 : f32
    %514 = vector.broadcast %cst_101 : f32 to vector<8x96xf32>
    %515 = arith.addf %514, %513 : vector<8x96xf32>
    %516 = arith.divf %514, %515 : vector<8x96xf32>
    %517 = vector.extract_strided_slice %510 {offsets = [0, 96], sizes = [8, 32], strides = [1, 1]} : vector<8x128xf32> to vector<8x32xf32>
    %518 = math.tanh %517 : vector<8x32xf32>
    %519 = vector.extract_strided_slice %516 {offsets = [0, 32], sizes = [8, 32], strides = [1, 1]} : vector<8x96xf32> to vector<8x32xf32>
    %520 = arith.mulf %519, %461 : vector<8x32xf32>
    %521 = vector.extract_strided_slice %516 {offsets = [0, 0], sizes = [8, 32], strides = [1, 1]} : vector<8x96xf32> to vector<8x32xf32>
    %522 = arith.mulf %521, %518 : vector<8x32xf32>
    %523 = arith.addf %520, %522 : vector<8x32xf32>
    %524 = vector.extract_strided_slice %516 {offsets = [0, 64], sizes = [8, 32], strides = [1, 1]} : vector<8x96xf32> to vector<8x32xf32>
    %525 = math.tanh %523 : vector<8x32xf32>
    %526 = arith.mulf %524, %525 : vector<8x32xf32>
    %527 = arith.index_cast %505 : i32 to index
    %c0_102 = arith.constant 0 : index
    %528 = vector.load %arg1[%527, %c0_102] : memref<64x1xf32, #tpu.memory_space<vmem>>, vector<8x1xf32>
    %529 = arith.subf %526, %457 : vector<8x32xf32>
    %530 = vector.broadcast %528 : vector<8x1xf32> to vector<8x32xf32>
    %531 = arith.mulf %530, %529 : vector<8x32xf32>
    %532 = arith.addf %457, %531 : vector<8x32xf32>
    %533 = arith.subf %523, %461 : vector<8x32xf32>
    %534 = vector.broadcast %528 : vector<8x1xf32> to vector<8x32xf32>
    %535 = arith.mulf %534, %533 : vector<8x32xf32>
    %536 = arith.addf %461, %535 : vector<8x32xf32>
    %537 = vector.broadcast %528 : vector<8x1xf32> to vector<8x32xf32>
    %538 = arith.mulf %532, %537 : vector<8x32xf32>
    %539 = arith.index_cast %505 : i32 to index
    %c32_103 = arith.constant 32 : index
    %540 = vector.load %arg8[%539, %c32_103] : memref<64x64xf32, #tpu.memory_space<vmem>>, vector<8x32xf32>
    tpu.vector_store %arg8[%539, %c32_103], %538 {strides = array<i32>} : memref<64x64xf32, #tpu.memory_space<vmem>>, vector<8x32xf32>,
    %c7_i32_104 = arith.constant 7 : i32
    %c8_i32_105 = arith.constant 8 : i32
    %541 = arith.muli %c7_i32_104, %c8_i32_105 : i32
    %542 = tpu.assume_multiple %541, 8 : i32
    %543 = arith.index_cast %542 : i32 to index
    %c0_106 = arith.constant 0 : index
    %544 = vector.load %arg9[%543, %c0_106] : memref<64x256xf32, #tpu.memory_space<vmem>>, vector<8x128xf32>
    %545 = arith.truncf %494 : vector<8x32xf32> to vector<8x32xbf16>
    %cst_107 = arith.constant dense<0.000000e+00> : vector<8x128xf32>
    %546 = tpu.matmul %545, %13, %cst_107 {dimension_numbers = #tpu.dot_dimension_numbers<[1], [0], [0], [1], [0, 0, 1, 1], [], []>} : vector<8x32xbf16>, vector<32x128xbf16>, vector<8x128xf32> -> vector<8x128xf32>
    %547 = arith.addf %544, %546 : vector<8x128xf32>
    %548 = vector.extract_strided_slice %547 {offsets = [0, 0], sizes = [8, 96], strides = [1, 1]} : vector<8x128xf32> to vector<8x96xf32>
    %549 = arith.negf %548 : vector<8x96xf32>
    %550 = math.exp %549 : vector<8x96xf32>
    %cst_108 = arith.constant 1.000000e+00 : f32
    %551 = vector.broadcast %cst_108 : f32 to vector<8x96xf32>
    %552 = arith.addf %551, %550 : vector<8x96xf32>
    %553 = arith.divf %551, %552 : vector<8x96xf32>
    %554 = vector.extract_strided_slice %547 {offsets = [0, 96], sizes = [8, 32], strides = [1, 1]} : vector<8x128xf32> to vector<8x32xf32>
    %555 = math.tanh %554 : vector<8x32xf32>
    %556 = vector.extract_strided_slice %553 {offsets = [0, 32], sizes = [8, 32], strides = [1, 1]} : vector<8x96xf32> to vector<8x32xf32>
    %557 = arith.mulf %556, %498 : vector<8x32xf32>
    %558 = vector.extract_strided_slice %553 {offsets = [0, 0], sizes = [8, 32], strides = [1, 1]} : vector<8x96xf32> to vector<8x32xf32>
    %559 = arith.mulf %558, %555 : vector<8x32xf32>
    %560 = arith.addf %557, %559 : vector<8x32xf32>
    %561 = vector.extract_strided_slice %553 {offsets = [0, 64], sizes = [8, 32], strides = [1, 1]} : vector<8x96xf32> to vector<8x32xf32>
    %562 = math.tanh %560 : vector<8x32xf32>
    %563 = arith.mulf %561, %562 : vector<8x32xf32>
    %564 = arith.index_cast %542 : i32 to index
    %c0_109 = arith.constant 0 : index
    %565 = vector.load %arg1[%564, %c0_109] : memref<64x1xf32, #tpu.memory_space<vmem>>, vector<8x1xf32>
    %566 = arith.subf %563, %494 : vector<8x32xf32>
    %567 = vector.broadcast %565 : vector<8x1xf32> to vector<8x32xf32>
    %568 = arith.mulf %567, %566 : vector<8x32xf32>
    %569 = arith.addf %494, %568 : vector<8x32xf32>
    %570 = arith.subf %560, %498 : vector<8x32xf32>
    %571 = vector.broadcast %565 : vector<8x1xf32> to vector<8x32xf32>
    %572 = arith.mulf %571, %570 : vector<8x32xf32>
    %573 = arith.addf %498, %572 : vector<8x32xf32>
    %574 = vector.broadcast %565 : vector<8x1xf32> to vector<8x32xf32>
    %575 = arith.mulf %569, %574 : vector<8x32xf32>
    %576 = arith.index_cast %542 : i32 to index
    %c0_110 = arith.constant 0 : index
    %577 = vector.load %arg8[%576, %c0_110] : memref<64x64xf32, #tpu.memory_space<vmem>>, vector<8x32xf32>
    tpu.vector_store %arg8[%576, %c0_110], %575 {strides = array<i32>} : memref<64x64xf32, #tpu.memory_space<vmem>>, vector<8x32xf32>,
    %c7_i32_111 = arith.constant 7 : i32
    %578 = arith.subi %c7_i32_111, %c7_i32_104 : i32
    %c8_i32_112 = arith.constant 8 : i32
    %579 = arith.muli %578, %c8_i32_112 : i32
    %580 = tpu.assume_multiple %579, 8 : i32
    %581 = arith.index_cast %580 : i32 to index
    %c128_113 = arith.constant 128 : index
    %582 = vector.load %arg9[%581, %c128_113] : memref<64x256xf32, #tpu.memory_space<vmem>>, vector<8x128xf32>
    %583 = arith.truncf %532 : vector<8x32xf32> to vector<8x32xbf16>
    %cst_114 = arith.constant dense<0.000000e+00> : vector<8x128xf32>
    %584 = tpu.matmul %583, %14, %cst_114 {dimension_numbers = #tpu.dot_dimension_numbers<[1], [0], [0], [1], [0, 0, 1, 1], [], []>} : vector<8x32xbf16>, vector<32x128xbf16>, vector<8x128xf32> -> vector<8x128xf32>
    %585 = arith.addf %582, %584 : vector<8x128xf32>
    %586 = vector.extract_strided_slice %585 {offsets = [0, 0], sizes = [8, 96], strides = [1, 1]} : vector<8x128xf32> to vector<8x96xf32>
    %587 = arith.negf %586 : vector<8x96xf32>
    %588 = math.exp %587 : vector<8x96xf32>
    %cst_115 = arith.constant 1.000000e+00 : f32
    %589 = vector.broadcast %cst_115 : f32 to vector<8x96xf32>
    %590 = arith.addf %589, %588 : vector<8x96xf32>
    %591 = arith.divf %589, %590 : vector<8x96xf32>
    %592 = vector.extract_strided_slice %585 {offsets = [0, 96], sizes = [8, 32], strides = [1, 1]} : vector<8x128xf32> to vector<8x32xf32>
    %593 = math.tanh %592 : vector<8x32xf32>
    %594 = vector.extract_strided_slice %591 {offsets = [0, 32], sizes = [8, 32], strides = [1, 1]} : vector<8x96xf32> to vector<8x32xf32>
    %595 = arith.mulf %594, %536 : vector<8x32xf32>
    %596 = vector.extract_strided_slice %591 {offsets = [0, 0], sizes = [8, 32], strides = [1, 1]} : vector<8x96xf32> to vector<8x32xf32>
    %597 = arith.mulf %596, %593 : vector<8x32xf32>
    %598 = arith.addf %595, %597 : vector<8x32xf32>
    %599 = vector.extract_strided_slice %591 {offsets = [0, 64], sizes = [8, 32], strides = [1, 1]} : vector<8x96xf32> to vector<8x32xf32>
    %600 = math.tanh %598 : vector<8x32xf32>
    %601 = arith.mulf %599, %600 : vector<8x32xf32>
    %602 = arith.index_cast %580 : i32 to index
    %c0_116 = arith.constant 0 : index
    %603 = vector.load %arg1[%602, %c0_116] : memref<64x1xf32, #tpu.memory_space<vmem>>, vector<8x1xf32>
    %604 = arith.subf %601, %532 : vector<8x32xf32>
    %605 = vector.broadcast %603 : vector<8x1xf32> to vector<8x32xf32>
    %606 = arith.mulf %605, %604 : vector<8x32xf32>
    %607 = arith.addf %532, %606 : vector<8x32xf32>
    %608 = arith.subf %598, %536 : vector<8x32xf32>
    %609 = vector.broadcast %603 : vector<8x1xf32> to vector<8x32xf32>
    %610 = arith.mulf %609, %608 : vector<8x32xf32>
    %611 = arith.addf %536, %610 : vector<8x32xf32>
    %612 = vector.broadcast %603 : vector<8x1xf32> to vector<8x32xf32>
    %613 = arith.mulf %607, %612 : vector<8x32xf32>
    %614 = arith.index_cast %580 : i32 to index
    %c32_117 = arith.constant 32 : index
    %615 = vector.load %arg8[%614, %c32_117] : memref<64x64xf32, #tpu.memory_space<vmem>>, vector<8x32xf32>
    tpu.vector_store %arg8[%614, %c32_117], %613 {strides = array<i32>} : memref<64x64xf32, #tpu.memory_space<vmem>>, vector<8x32xf32>,
    %c8_i32_118 = arith.constant 8 : i32
    return
  }
}

</mosaic_0001>

<llo_original>
// kernel: tpu_custom_call.1
$region0: #{tpu_custom_call.1}
  #allocation0 [shape = 'u32[]', space=smem, size = 0x4, offset = 0x4, fixed_abs, tag = 'smem constant byte address 0x4 - core index']
  #allocation1 [shape = 'u32[144,128]{1,0:T(1,128)}', space=vmem, size = 0x12000, scoped, tag = 'internal scratch']
  #allocation2 [shape = 'f32[64,256]{1,0:T(8,128)}', space=vmem, size = 0x10000, scoped, tag = 'scratch operand']
  %s0 = inlined_call_operand.vmem [shape: bf16[64,16], index: 0, kind: input, shape index: {}]
  %s1 = inlined_call_operand.vmem [shape: f32[64,1], index: 1, kind: input, shape index: {}]
  %s2 = inlined_call_operand.vmem [shape: bf16[16,32], index: 2, kind: input, shape index: {}]
  %s3 = inlined_call_operand.vmem [shape: f32[1,32], index: 3, kind: input, shape index: {}]
  %s4 = inlined_call_operand.vmem [shape: bf16[32,256], index: 4, kind: input, shape index: {}]
  %s5 = inlined_call_operand.vmem [shape: f32[1,256], index: 5, kind: input, shape index: {}]
  %s6 = inlined_call_operand.vmem [shape: bf16[32,128], index: 6, kind: input, shape index: {}]
  %s7 = inlined_call_operand.vmem [shape: bf16[32,128], index: 7, kind: input, shape index: {}]
  %s8 = inlined_call_operand.hbm [shape: f32[64,64], index: 8, kind: output, shape index: {}]
  %s9 = sld [smem:[#allocation0]]
  $region42: #{tpu_custom_call.1} parent=0
    _
  %s11 = ssub.s32 1, %s9
  %s12 = scalar_select 0, %s11, %s9
  $region1: #{tpu_custom_call.1} parent=0
    #allocation3 [shape = 'u8[32768]{0}', space=vmem, size = 0x8000, scoped, tag = 'output window, operand 0, single buffered']
    #allocation4 [shape = 's32[1]{0}', space=sflag, size = 0x4, scoped, tag = 'scoped memory for tpu_custom_call.1']
    %13 = vsyncpa [#allocation4], 0
    // Predicated region
    $region2: #{tpu_custom_call.1} parent=1 // pred_check
      _
    $region3: #{tpu_custom_call.1} parent=1 // pred_check_branch
      %15 = sbr.rel (0) target = $region5
    $region4: #{tpu_custom_call.1} parent=1 // pred_region
      _
    $region5: #{tpu_custom_call.1} parent=1 // pred_fallthru
      _
    // Predicated region
    $region6: #{tpu_custom_call.1} parent=1 // pred_check
      _
    $region7: #{tpu_custom_call.1} parent=1 // pred_check_branch
      %17 = sbr.rel (0) target = $region9
    $region8: #{tpu_custom_call.1} parent=1 // pred_region
      _
    $region9: #{tpu_custom_call.1} parent=1 // pred_fallthru
      _
    // Predicated region
    $region10: #{tpu_custom_call.1} parent=1 // pred_check
      _
    $region11: #{tpu_custom_call.1} parent=1 // pred_check_branch
      %19 = sbr.rel (0) target = $region13
    $region12: #{tpu_custom_call.1} parent=1 // pred_region
      _
    $region13: #{tpu_custom_call.1} parent=1 // pred_fallthru
      _
    // Predicated region
    $region14: #{tpu_custom_call.1} parent=1 // pred_check
      _
    $region15: #{tpu_custom_call.1} parent=1 // pred_check_branch
      %21 = sbr.rel (0) target = $region17
    $region16: #{tpu_custom_call.1} parent=1 // pred_region
      _
    $region17: #{tpu_custom_call.1} parent=1 // pred_fallthru
      _
    // Predicated region
    $region18: #{tpu_custom_call.1} parent=1 // pred_check
      _
    $region19: #{tpu_custom_call.1} parent=1 // pred_check_branch
      %23 = sbr.rel (0) target = $region21
    $region20: #{tpu_custom_call.1} parent=1 // pred_region
      _
    $region21: #{tpu_custom_call.1} parent=1 // pred_fallthru
      _
    // Predicated region
    $region22: #{tpu_custom_call.1} parent=1 // pred_check
      _
    $region23: #{tpu_custom_call.1} parent=1 // pred_check_branch
      %25 = sbr.rel (0) target = $region25
    $region24: #{tpu_custom_call.1} parent=1 // pred_region
      _
    $region25: #{tpu_custom_call.1} parent=1 // pred_fallthru
      _
    // Predicated region
    $region26: #{tpu_custom_call.1} parent=1 // pred_check
      _
    $region27: #{tpu_custom_call.1} parent=1 // pred_check_branch
      %27 = sbr.rel (0) target = $region29
    $region28: #{tpu_custom_call.1} parent=1 // pred_region
      _
    $region29: #{tpu_custom_call.1} parent=1 // pred_fallthru
      _
    // Predicated region
    $region30: #{tpu_custom_call.1} parent=1 // pred_check
      _
    $region31: #{tpu_custom_call.1} parent=1 // pred_check_branch
      %29 = sbr.rel (0) target = $region33
    $region32: #{tpu_custom_call.1} parent=1 // pred_region
      _
    $region33: #{tpu_custom_call.1} parent=1 // pred_fallthru
      _
    %v31 = vld [vmem:[%s0] sm:$0xf]
    %v32 = vld [vmem:[%s0 + $0x4] sm:$0xf]
    %v33 = vld [vmem:[%s0 + $0x8] sm:$0xf]
    %v34 = vld [vmem:[%s0 + $0xc] sm:$0xf]
    %v35 = vld [vmem:[%s0 + $0x10] sm:$0xf]
    %v36 = vld [vmem:[%s0 + $0x14] sm:$0xf]
    %v37 = vld [vmem:[%s0 + $0x18] sm:$0xf]
    %v38 = vld [vmem:[%s0 + $0x1c] sm:$0xf]
    %v39 = vld [vmem:[%s2] sm:$0xf]
    %v40 = vld [vmem:[%s2 + $0x4] sm:$0xf]
    %v41 = vld [vmem:[%s3] sm:$0x1]
    %v43 = vlaneseq
    %v44 = vshrl.u32 %v43, 7
    %v45 = vsub.s32 0, %v44
    %v46 = vrot.slane %v41, %v45
    %v56 = vunpack.c.l.b16 %v31
    %v57 = vunpack.c.l.b16 %v32
    %v58 = vunpack.c.l.b16 %v33
    %v59 = vunpack.c.l.b16 %v34
    %v60 = vunpack.c.l.b16 %v35
    %v61 = vunpack.c.l.b16 %v36
    %v62 = vunpack.c.l.b16 %v37
    %v63 = vunpack.c.l.b16 %v38
    %v64 = vpack.c.b16 %v57, %v56
    %v65 = vpack.c.b16 %v59, %v58
    %v66 = vpack.c.b16 %v61, %v60
    %v67 = vpack.c.b16 %v63, %v62
    %v70 = vunpack.c.l.b16 %v39
    %v71 = vunpack.c.l.b16 %v40
    %v72 = vpack.c.b16 %v71, %v70
    %vm74 = vcmask 130048
    %v76 = vsel %vm74, %v64, 0
    %v79 = vsel %vm74, %v65, 0
    %v82 = vsel %vm74, %v66, 0
    %v85 = vsel %vm74, %v67, 0
    %87 = vmatprep.subr.bf16.mxu0 0
    %88 = vmatpush1.bf16.msra.mxu0 %v72
    %89 = vmatprep.subr.bf16.mxu0 0
    %90 = vmatpush1.bf16.msra.mxu0 0
    %91 = vmatprep.subr.bf16.mxu0 0
    %92 = vmatpush1.bf16.msra.mxu0 0
    %93 = vmatprep.subr.bf16.mxu0 0
    %94 = vmatpush1.bf16.msra.mxu0 0
    %95 = vmatprep.subr.bf16.mxu0 0
    %96 = vmatpush1.bf16.msra.mxu0 0
    %97 = vmatprep.subr.bf16.mxu0 0
    %98 = vmatpush1.bf16.msra.mxu0 0
    %99 = vmatprep.subr.bf16.mxu0 0
    %100 = vmatpush1.bf16.msra.mxu0 0
    %101 = vmatprep.subr.bf16.mxu0 0
    %102 = vmatpush1.bf16.msra.mxu0 0
    %103 = vmatprep.subr.bf16.mxu0 0
    %104 = vmatpush1.bf16.msra.mxu0 0
    %105 = vmatprep.subr.bf16.mxu0 0
    %106 = vmatpush1.bf16.msra.mxu0 0
    %107 = vmatprep.subr.bf16.mxu0 0
    %108 = vmatpush1.bf16.msra.mxu0 0
    %109 = vmatprep.subr.bf16.mxu0 0
    %110 = vmatpush1.bf16.msra.mxu0 0
    %111 = vmatprep.subr.bf16.mxu0 0
    %112 = vmatpush1.bf16.msra.mxu0 0
    %113 = vmatprep.subr.bf16.mxu0 0
    %114 = vmatpush1.bf16.msra.mxu0 0
    %115 = vmatprep.subr.bf16.mxu0 0
    %116 = vmatpush1.bf16.msra.mxu0 0
    %117 = vmatprep.subr.bf16.mxu0 0
    %118 = vmatpush1.bf16.msra.mxu0 0
    %119 = vmatprep.mubr.bf16.mxu0 0
    %120 = vmatmul.mubr.bf16.gmra.mrb[0].mxu0 %v76
    %v121 = vpop.f32.mrb[0].mxu0
    %v122 = vadd.f32 %v46, %v121
    %v123 = vpop.f32.mrb[0].mxu0
    %v124 = vpop.f32.mrb[0].mxu0
    %v125 = vadd.f32 %v46, %v124
    %v126 = vpop.f32.mrb[0].mxu0
    %127 = vmatprep.mubr.bf16.mxu0 0
    %128 = vmatmul.mubr.bf16.gmra.mrb[0].mxu0 %v79
    %v129 = vpop.f32.mrb[0].mxu0
    %v130 = vadd.f32 %v46, %v129
    %v131 = vpop.f32.mrb[0].mxu0
    %v132 = vpop.f32.mrb[0].mxu0
    %v133 = vadd.f32 %v46, %v132
    %v134 = vpop.f32.mrb[0].mxu0
    %135 = vmatprep.mubr.bf16.mxu0 0
    %136 = vmatmul.mubr.bf16.gmra.mrb[0].mxu0 %v82
    %v137 = vpop.f32.mrb[0].mxu0
    %v138 = vadd.f32 %v46, %v137
    %v139 = vpop.f32.mrb[0].mxu0
    %v140 = vpop.f32.mrb[0].mxu0
    %v141 = vadd.f32 %v46, %v140
    %v142 = vpop.f32.mrb[0].mxu0
    %143 = vmatprep.mubr.bf16.mxu0 0
    %144 = vmatmul.mubr.bf16.gmra.mrb[0].mxu0 %v85
    %v145 = vpop.f32.mrb[0].mxu0
    %v146 = vadd.f32 %v46, %v145
    %v147 = vpop.f32.mrb[0].mxu0
    %v148 = vpop.f32.mrb[0].mxu0
    %v149 = vadd.f32 %v46, %v148
    %v150 = vpop.f32.mrb[0].mxu0
    %151 = vdwg.mxu0
    %v152 = vpack.c.bf16 %v125, %v122
    %v153 = vpack.c.bf16 %v133, %v130
    %v154 = vpack.c.bf16 %v141, %v138
    %v155 = vpack.c.bf16 %v149, %v146
    %v156 = vld [vmem:[%s4] sm:$0xff]
    %v157 = vld [vmem:[%s4 + $0x8] sm:$0xff]
    %v158 = vld [vmem:[%s4 + $0x10] sm:$0xff]
    %v159 = vld [vmem:[%s4 + $0x18] sm:$0xff]
    %v160 = vld [vmem:[%s5] sm:$0x3]
    %v162 = vlaneseq
    %v163 = vshrl.u32 %v162, 7
    %v164 = vsub.s32 0, %v163
    %v165 = vrot.slane %v160, %v164
    %v166 = vlaneseq
    %v167 = vshrl.u32 %v166, 7
    %v168 = vsub.s32 1, %v167
    %v169 = vrot.slane %v160, %v168
    %v176 = vunpack.c.l.b16 %v156
    %v177 = vunpack.c.h.b16 %v156
    %v178 = vunpack.c.l.b16 %v157
    %v179 = vunpack.c.h.b16 %v157
    %v180 = vunpack.c.l.b16 %v158
    %v181 = vunpack.c.h.b16 %v158
    %v182 = vunpack.c.l.b16 %v159
    %v183 = vunpack.c.h.b16 %v159
    %v184 = vpack.c.b16 %v178, %v176
    %v185 = vpack.c.b16 %v179, %v177
    %v186 = vpack.c.b16 %v182, %v180
    %v187 = vpack.c.b16 %v183, %v181
    %vm192 = vcmask 261120
    %v194 = vsel %vm192, %v152, 0
    %v197 = vsel %vm192, %v153, 0
    %v200 = vsel %vm192, %v154, 0
    %v203 = vsel %vm192, %v155, 0
    %205 = vmatprep.subr.bf16.mxu0 %v185
    %206 = vmatpush1.bf16.msra.mxu0 %v184
    %207 = vmatprep.subr.bf16.mxu0 %v187
    %208 = vmatpush1.bf16.msra.mxu0 %v186
    %209 = vmatprep.subr.bf16.mxu0 0
    %210 = vmatpush1.bf16.msra.mxu0 0
    %211 = vmatprep.subr.bf16.mxu0 0
    %212 = vmatpush1.bf16.msra.mxu0 0
    %213 = vmatprep.subr.bf16.mxu0 0
    %214 = vmatpush1.bf16.msra.mxu0 0
    %215 = vmatprep.subr.bf16.mxu0 0
    %216 = vmatpush1.bf16.msra.mxu0 0
    %217 = vmatprep.subr.bf16.mxu0 0
    %218 = vmatpush1.bf16.msra.mxu0 0
    %219 = vmatprep.subr.bf16.mxu0 0
    %220 = vmatpush1.bf16.msra.mxu0 0
    %221 = vmatprep.subr.bf16.mxu0 0
    %222 = vmatpush1.bf16.msra.mxu0 0
    %223 = vmatprep.subr.bf16.mxu0 0
    %224 = vmatpush1.bf16.msra.mxu0 0
    %225 = vmatprep.subr.bf16.mxu0 0
    %226 = vmatpush1.bf16.msra.mxu0 0
    %227 = vmatprep.subr.bf16.mxu0 0
    %228 = vmatpush1.bf16.msra.mxu0 0
    %229 = vmatprep.subr.bf16.mxu0 0
    %230 = vmatpush1.bf16.msra.mxu0 0
    %231 = vmatprep.subr.bf16.mxu0 0
    %232 = vmatpush1.bf16.msra.mxu0 0
    %233 = vmatprep.subr.bf16.mxu0 0
    %234 = vmatpush1.bf16.msra.mxu0 0
    %235 = vmatprep.subr.bf16.mxu0 0
    %236 = vmatpush1.bf16.msra.mxu0 0
    %237 = vmatprep.mubr.bf16.mxu0 0
    %238 = vmatmul.mubr.bf16.gmra.mrb[0].mxu0 %v194
    %v239 = vpop.f32.mrb[0].mxu0
    %v240 = vadd.f32 %v165, %v239
    %v241 = vpop.f32.mrb[0].mxu0
    %v242 = vadd.f32 %v169, %v241
    %v243 = vpop.f32.mrb[0].mxu0
    %v244 = vadd.f32 %v165, %v243
    %v245 = vpop.f32.mrb[0].mxu0
    %v246 = vadd.f32 %v169, %v245
    %247 = vmatprep.mubr.bf16.mxu0 0
    %248 = vmatmul.mubr.bf16.gmra.mrb[0].mxu0 %v197
    %v249 = vpop.f32.mrb[0].mxu0
    %v250 = vadd.f32 %v165, %v249
    %v251 = vpop.f32.mrb[0].mxu0
    %v252 = vadd.f32 %v169, %v251
    %v253 = vpop.f32.mrb[0].mxu0
    %v254 = vadd.f32 %v165, %v253
    %v255 = vpop.f32.mrb[0].mxu0
    %v256 = vadd.f32 %v169, %v255
    %257 = vmatprep.mubr.bf16.mxu0 0
    %258 = vmatmul.mubr.bf16.gmra.mrb[0].mxu0 %v200
    %v259 = vpop.f32.mrb[0].mxu0
    %v260 = vadd.f32 %v165, %v259
    %v261 = vpop.f32.mrb[0].mxu0
    %v262 = vadd.f32 %v169, %v261
    %v263 = vpop.f32.mrb[0].mxu0
    %v264 = vadd.f32 %v165, %v263
    %v265 = vpop.f32.mrb[0].mxu0
    %v266 = vadd.f32 %v169, %v265
    %267 = vmatprep.mubr.bf16.mxu0 0
    %268 = vmatmul.mubr.bf16.gmra.mrb[0].mxu0 %v203
    %v269 = vpop.f32.mrb[0].mxu0
    %v270 = vadd.f32 %v165, %v269
    %v271 = vpop.f32.mrb[0].mxu0
    %v272 = vadd.f32 %v169, %v271
    %v273 = vpop.f32.mrb[0].mxu0
    %v274 = vadd.f32 %v165, %v273
    %v275 = vpop.f32.mrb[0].mxu0
    %v276 = vadd.f32 %v169, %v275
    %277 = vdwg.mxu0
    %278 = vst [vmem:[#allocation2] sm:$0xff] %v240
    %279 = vst [vmem:[#allocation2 + $0x8] sm:$0xff] %v242
    %280 = vst [vmem:[#allocation2 + $0x10] sm:$0xff] %v244
    %281 = vst [vmem:[#allocation2 + $0x18] sm:$0xff] %v246
    %282 = vst [vmem:[#allocation2 + $0x20] sm:$0xff] %v250
    %283 = vst [vmem:[#allocation2 + $0x28] sm:$0xff] %v252
    %284 = vst [vmem:[#allocation2 + $0x30] sm:$0xff] %v254
    %285 = vst [vmem:[#allocation2 + $0x38] sm:$0xff] %v256
    %286 = vst [vmem:[#allocation2 + $0x40] sm:$0xff] %v260
    %287 = vst [vmem:[#allocation2 + $0x48] sm:$0xff] %v262
    %288 = vst [vmem:[#allocation2 + $0x50] sm:$0xff] %v264
    %289 = vst [vmem:[#allocation2 + $0x58] sm:$0xff] %v266
    %290 = vst [vmem:[#allocation2 + $0x60] sm:$0xff] %v270
    %291 = vst [vmem:[#allocation2 + $0x68] sm:$0xff] %v272
    %292 = vst [vmem:[#allocation2 + $0x70] sm:$0xff] %v274
    %293 = vst [vmem:[#allocation2 + $0x78] sm:$0xff] %v276
    %v294 = vld [vmem:[%s6] sm:$0xf]
    %v295 = vld [vmem:[%s6 + $0x4] sm:$0xf]
    %v296 = vld [vmem:[%s6 + $0x8] sm:$0xf]
    %v297 = vld [vmem:[%s6 + $0xc] sm:$0xf]
    %v298 = vld [vmem:[%s7] sm:$0xf]
    %v299 = vld [vmem:[%s7 + $0x4] sm:$0xf]
    %v300 = vld [vmem:[%s7 + $0x8] sm:$0xf]
    %v301 = vld [vmem:[%s7 + $0xc] sm:$0xf]
    %s302 = smul.u32 0, 2
    %s303 = smul.addr %s302, 8
    %s304 = scalar_lea.vmem [#allocation2], %s303
    %v305 = vld [vmem:[%s304] sm:$0xff]
    %v310 = vunpack.c.l.b16 %v294
    %v311 = vunpack.c.l.b16 %v295
    %v312 = vunpack.c.l.b16 %v296
    %v313 = vunpack.c.l.b16 %v297
    %v314 = vpack.c.b16 %v311, %v310
    %v315 = vpack.c.b16 %v313, %v312
    %v319 = vsel %vm192, 0, 0
    %321 = vmatprep.subr.bf16.mxu0 0
    %322 = vmatpush1.bf16.msra.mxu0 %v314
    %323 = vmatprep.subr.bf16.mxu0 0
    %324 = vmatpush1.bf16.msra.mxu0 %v315
    %325 = vmatprep.subr.bf16.mxu0 0
    %326 = vmatpush1.bf16.msra.mxu0 0
    %327 = vmatprep.subr.bf16.mxu0 0
    %328 = vmatpush1.bf16.msra.mxu0 0
    %329 = vmatprep.subr.bf16.mxu0 0
    %330 = vmatpush1.bf16.msra.mxu0 0
    %331 = vmatprep.subr.bf16.mxu0 0
    %332 = vmatpush1.bf16.msra.mxu0 0
    %333 = vmatprep.subr.bf16.mxu0 0
    %334 = vmatpush1.bf16.msra.mxu0 0
    %335 = vmatprep.subr.bf16.mxu0 0
    %336 = vmatpush1.bf16.msra.mxu0 0
    %337 = vmatprep.subr.bf16.mxu0 0
    %338 = vmatpush1.bf16.msra.mxu0 0
    %339 = vmatprep.subr.bf16.mxu0 0
    %340 = vmatpush1.bf16.msra.mxu0 0
    %341 = vmatprep.subr.bf16.mxu0 0
    %342 = vmatpush1.bf16.msra.mxu0 0
    %343 = vmatprep.subr.bf16.mxu0 0
    %344 = vmatpush1.bf16.msra.mxu0 0
    %345 = vmatprep.subr.bf16.mxu0 0
    %346 = vmatpush1.bf16.msra.mxu0 0
    %347 = vmatprep.subr.bf16.mxu0 0
    %348 = vmatpush1.bf16.msra.mxu0 0
    %349 = vmatprep.subr.bf16.mxu0 0
    %350 = vmatpush1.bf16.msra.mxu0 0
    %351 = vmatprep.subr.bf16.mxu0 0
    %352 = vmatpush1.bf16.msra.mxu0 0
    %353 = vmatprep.mubr.bf16.mxu0 0
    %354 = vmatmul.mubr.bf16.gmra.mrb[0].mxu0 %v319
    %v355 = vpop.f32.mrb[0].mxu0
    %v356 = vadd.f32 0.0, %v355
    %v357 = vpop.f32.mrb[0].mxu0
    %v358 = vpop.f32.mrb[0].mxu0
    %v359 = vpop.f32.mrb[0].mxu0
    %360 = vdwg.mxu0
    %v361 = vadd.f32 %v305, %v356
    %v362 = vxor.u32 %v361, 2147483648
    %v363 = vmul.f32 %v362, 1.442695
    %v364 = vpow.pop %v363
    %v365 = vadd.f32 %v364, 1.0
    %v366 = vrcp.pop %v365
    %v367 = vmul.f32 1.0, %v366
    %v368 = vtanh.pop %v361
    %v369 = vmul.f32 %v367, 0.0
    %371 = vrot.lane.b32.xlu0 %v368, 32
    %v372 = vpop.permute.xlu0 %371
    %v374 = vmul.f32 %v367, %v372
    %376 = vrot.lane.b32.xlu0 %v374, 32
    %v377 = vpop.permute.xlu0 %376
    %v379 = vadd.f32 %v369, %v377
    %v380 = vtanh.pop %v379
    %382 = vrot.lane.b32.xlu0 %v380, 32
    %v383 = vpop.permute.xlu0 %382
    %v385 = vmul.f32 %v367, %v383
    %v386 = vld [vmem:[%s1] sm:$0xff]
    %388 = vset.pattern.permute.xlu0 0
    %389 = vperm.xlu0 %388, %v386
    %v390 = vpop.permute.xlu0 %389
    %v392 = vmul.f32 %v390, %v385
    %v393 = vadd.f32 %v392, 0.0
    %v394 = vmul.f32 %v390, %v379
    %v395 = vadd.f32 %v394, 0.0
    %v396 = vmul.f32 %v393, %v390
    %398 = vrot.lane.b32.xlu0 %v396, 64
    %v399 = vpop.permute.xlu0 %398
    %401 = vst.msk [vmem:[#allocation3] sm:$0xff] %vm192, %v399
    %s402 = smul.u32 7, 2
    %s403 = smul.addr %s402, 8
    %s404 = scalar_lea.vmem [#allocation2], %s403
    %v405 = vld [vmem:[%s404 + $0x8] sm:$0xff]
    %v410 = vunpack.c.l.b16 %v298
    %v411 = vunpack.c.l.b16 %v299
    %v412 = vunpack.c.l.b16 %v300
    %v413 = vunpack.c.l.b16 %v301
    %v414 = vpack.c.b16 %v411, %v410
    %v415 = vpack.c.b16 %v413, %v412
    %418 = vmatprep.subr.bf16.mxu0 0
    %419 = vmatpush1.bf16.msra.mxu0 %v414
    %420 = vmatprep.subr.bf16.mxu0 0
    %421 = vmatpush1.bf16.msra.mxu0 %v415
    %422 = vmatprep.subr.bf16.mxu0 0
    %423 = vmatpush1.bf16.msra.mxu0 0
    %424 = vmatprep.subr.bf16.mxu0 0
    %425 = vmatpush1.bf16.msra.mxu0 0
    %426 = vmatprep.subr.bf16.mxu0 0
    %427 = vmatpush1.bf16.msra.mxu0 0
    %428 = vmatprep.subr.bf16.mxu0 0
    %429 = vmatpush1.bf16.msra.mxu0 0
    %430 = vmatprep.subr.bf16.mxu0 0
    %431 = vmatpush1.bf16.msra.mxu0 0
    %432 = vmatprep.subr.bf16.mxu0 0
    %433 = vmatpush1.bf16.msra.mxu0 0
    %434 = vmatprep.subr.bf16.mxu0 0
    %435 = vmatpush1.bf16.msra.mxu0 0
    %436 = vmatprep.subr.bf16.mxu0 0
    %437 = vmatpush1.bf16.msra.mxu0 0
    %438 = vmatprep.subr.bf16.mxu0 0
    %439 = vmatpush1.bf16.msra.mxu0 0
    %440 = vmatprep.subr.bf16.mxu0 0
    %441 = vmatpush1.bf16.msra.mxu0 0
    %442 = vmatprep.subr.bf16.mxu0 0
    %443 = vmatpush1.bf16.msra.mxu0 0
    %444 = vmatprep.subr.bf16.mxu0 0
    %445 = vmatpush1.bf16.msra.mxu0 0
    %446 = vmatprep.subr.bf16.mxu0 0
    %447 = vmatpush1.bf16.msra.mxu0 0
    %448 = vmatprep.subr.bf16.mxu0 0
    %449 = vmatpush1.bf16.msra.mxu0 0
    %450 = vmatprep.mubr.bf16.mxu0 0
    %451 = vmatmul.mubr.bf16.gmra.mrb[0].mxu0 %v319
    %v452 = vpop.f32.mrb[0].mxu0
    %v453 = vadd.f32 0.0, %v452
    %v454 = vpop.f32.mrb[0].mxu0
    %v455 = vpop.f32.mrb[0].mxu0
    %v456 = vpop.f32.mrb[0].mxu0
    %457 = vdwg.mxu0
    %v458 = vadd.f32 %v405, %v453
    %v459 = vxor.u32 %v458, 2147483648
    %v460 = vmul.f32 %v459, 1.442695
    %v461 = vpow.pop %v460
    %v462 = vadd.f32 %v461, 1.0
    %v463 = vrcp.pop %v462
    %v464 = vmul.f32 1.0, %v463
    %v465 = vtanh.pop %v458
    %v466 = vmul.f32 %v464, 0.0
    %468 = vrot.lane.b32.xlu0 %v465, 32
    %v469 = vpop.permute.xlu0 %468
    %v471 = vmul.f32 %v464, %v469
    %473 = vrot.lane.b32.xlu0 %v471, 32
    %v474 = vpop.permute.xlu0 %473
    %v476 = vadd.f32 %v466, %v474
    %v477 = vtanh.pop %v476
    %479 = vrot.lane.b32.xlu0 %v477, 32
    %v480 = vpop.permute.xlu0 %479
    %v482 = vmul.f32 %v464, %v480
    %s483 = scalar_lea.vmem %s1, 56
    %v484 = vld [vmem:[%s483] sm:$0xff]
    %486 = vset.pattern.permute.xlu0 0
    %487 = vperm.xlu0 %486, %v484
    %v488 = vpop.permute.xlu0 %487
    %v490 = vmul.f32 %v488, %v482
    %v491 = vadd.f32 %v490, 0.0
    %v492 = vmul.f32 %v488, %v476
    %v493 = vadd.f32 %v492, 0.0
    %v494 = vmul.f32 %v491, %v488
    %496 = vrot.lane.b32.xlu0 %v494, 96
    %v497 = vpop.permute.xlu0 %496
    %s499 = scalar_lea.vmem [#allocation3], 56
    %vm500 = vcmask 523520
    %501 = vst.msk [vmem:[%s499] sm:$0xff] %vm500, %v497
    %s502 = smul.u32 1, 2
    %s503 = smul.addr %s502, 8
    %s504 = scalar_lea.vmem [#allocation2], %s503
    %v505 = vld [vmem:[%s504] sm:$0xff]
    %v506 = vpack.c.bf16 %v393, %v393
    %508 = vrot.lane.b32.xlu0 %v506, 64
    %v509 = vpop.permute.xlu0 %508
    %v511 = vsel %vm192, %v509, 0
    %513 = vmatprep.subr.bf16.mxu0 0
    %514 = vmatpush1.bf16.msra.mxu0 %v314
    %515 = vmatprep.subr.bf16.mxu0 0
    %516 = vmatpush1.bf16.msra.mxu0 %v315
    %517 = vmatprep.subr.bf16.mxu0 0
    %518 = vmatpush1.bf16.msra.mxu0 0
    %519 = vmatprep.subr.bf16.mxu0 0
    %520 = vmatpush1.bf16.msra.mxu0 0
    %521 = vmatprep.subr.bf16.mxu0 0
    %522 = vmatpush1.bf16.msra.mxu0 0
    %523 = vmatprep.subr.bf16.mxu0 0
    %524 = vmatpush1.bf16.msra.mxu0 0
    %525 = vmatprep.subr.bf16.mxu0 0
    %526 = vmatpush1.bf16.msra.mxu0 0
    %527 = vmatprep.subr.bf16.mxu0 0
    %528 = vmatpush1.bf16.msra.mxu0 0
    %529 = vmatprep.subr.bf16.mxu0 0
    %530 = vmatpush1.bf16.msra.mxu0 0
    %531 = vmatprep.subr.bf16.mxu0 0
    %532 = vmatpush1.bf16.msra.mxu0 0
    %533 = vmatprep.subr.bf16.mxu0 0
    %534 = vmatpush1.bf16.msra.mxu0 0
    %535 = vmatprep.subr.bf16.mxu0 0
    %536 = vmatpush1.bf16.msra.mxu0 0
    %537 = vmatprep.subr.bf16.mxu0 0
    %538 = vmatpush1.bf16.msra.mxu0 0
    %539 = vmatprep.subr.bf16.mxu0 0
    %540 = vmatpush1.bf16.msra.mxu0 0
    %541 = vmatprep.subr.bf16.mxu0 0
    %542 = vmatpush1.bf16.msra.mxu0 0
    %543 = vmatprep.subr.bf16.mxu0 0
    %544 = vmatpush1.bf16.msra.mxu0 0
    %545 = vmatprep.mubr.bf16.mxu0 0
    %546 = vmatmul.mubr.bf16.gmra.mrb[0].mxu0 %v511
    %v547 = vpop.f32.mrb[0].mxu0
    %v548 = vadd.f32 0.0, %v547
    %v549 = vpop.f32.mrb[0].mxu0
    %v550 = vpop.f32.mrb[0].mxu0
    %v551 = vpop.f32.mrb[0].mxu0
    %552 = vdwg.mxu0
    %v553 = vadd.f32 %v505, %v548
    %v554 = vxor.u32 %v553, 2147483648
    %v555 = vmul.f32 %v554, 1.442695
    %v556 = vpow.pop %v555
    %v557 = vadd.f32 %v556, 1.0
    %v558 = vrcp.pop %v557
    %v559 = vmul.f32 1.0, %v558
    %v560 = vtanh.pop %v553
    %v561 = vmul.f32 %v559, %v395
    %563 = vrot.lane.b32.xlu0 %v560, 32
    %v564 = vpop.permute.xlu0 %563
    %v566 = vmul.f32 %v559, %v564
    %568 = vrot.lane.b32.xlu0 %v566, 32
    %v569 = vpop.permute.xlu0 %568
    %v571 = vadd.f32 %v561, %v569
    %v572 = vtanh.pop %v571
    %574 = vrot.lane.b32.xlu0 %v572, 32
    %v575 = vpop.permute.xlu0 %574
    %v577 = vmul.f32 %v559, %v575
    %s578 = scalar_lea.vmem %s1, 8
    %v579 = vld [vmem:[%s578] sm:$0xff]
    %v580 = vsub.f32 %v577, %v393
    %582 = vset.pattern.permute.xlu0 0
    %583 = vperm.xlu0 %582, %v579
    %v584 = vpop.permute.xlu0 %583
    %v586 = vmul.f32 %v584, %v580
    %v587 = vadd.f32 %v393, %v586
    %v588 = vsub.f32 %v571, %v395
    %v589 = vmul.f32 %v584, %v588
    %v590 = vadd.f32 %v395, %v589
    %v591 = vmul.f32 %v587, %v584
    %593 = vrot.lane.b32.xlu0 %v591, 64
    %v594 = vpop.permute.xlu0 %593
    %s596 = scalar_lea.vmem [#allocation3], 8
    %597 = vst.msk [vmem:[%s596] sm:$0xff] %vm192, %v594
    %s598 = smul.u32 6, 2
    %s599 = smul.addr %s598, 8
    %s600 = scalar_lea.vmem [#allocation2], %s599
    %v601 = vld [vmem:[%s600 + $0x8] sm:$0xff]
    %v602 = vpack.c.bf16 %v491, %v491
    %604 = vrot.lane.b32.xlu0 %v602, 64
    %v605 = vpop.permute.xlu0 %604
    %v607 = vsel %vm192, %v605, 0
    %609 = vmatprep.subr.bf16.mxu0 0
    %610 = vmatpush1.bf16.msra.mxu0 %v414
    %611 = vmatprep.subr.bf16.mxu0 0
    %612 = vmatpush1.bf16.msra.mxu0 %v415
    %613 = vmatprep.subr.bf16.mxu0 0
    %614 = vmatpush1.bf16.msra.mxu0 0
    %615 = vmatprep.subr.bf16.mxu0 0
    %616 = vmatpush1.bf16.msra.mxu0 0
    %617 = vmatprep.subr.bf16.mxu0 0
    %618 = vmatpush1.bf16.msra.mxu0 0
    %619 = vmatprep.subr.bf16.mxu0 0
    %620 = vmatpush1.bf16.msra.mxu0 0
    %621 = vmatprep.subr.bf16.mxu0 0
    %622 = vmatpush1.bf16.msra.mxu0 0
    %623 = vmatprep.subr.bf16.mxu0 0
    %624 = vmatpush1.bf16.msra.mxu0 0
    %625 = vmatprep.subr.bf16.mxu0 0
    %626 = vmatpush1.bf16.msra.mxu0 0
    %627 = vmatprep.subr.bf16.mxu0 0
    %628 = vmatpush1.bf16.msra.mxu0 0
    %629 = vmatprep.subr.bf16.mxu0 0
    %630 = vmatpush1.bf16.msra.mxu0 0
    %631 = vmatprep.subr.bf16.mxu0 0
    %632 = vmatpush1.bf16.msra.mxu0 0
    %633 = vmatprep.subr.bf16.mxu0 0
    %634 = vmatpush1.bf16.msra.mxu0 0
    %635 = vmatprep.subr.bf16.mxu0 0
    %636 = vmatpush1.bf16.msra.mxu0 0
    %637 = vmatprep.subr.bf16.mxu0 0
    %638 = vmatpush1.bf16.msra.mxu0 0
    %639 = vmatprep.subr.bf16.mxu0 0
    %640 = vmatpush1.bf16.msra.mxu0 0
    %641 = vmatprep.mubr.bf16.mxu0 0
    %642 = vmatmul.mubr.bf16.gmra.mrb[0].mxu0 %v607
    %v643 = vpop.f32.mrb[0].mxu0
    %v644 = vadd.f32 0.0, %v643
    %v645 = vpop.f32.mrb[0].mxu0
    %v646 = vpop.f32.mrb[0].mxu0
    %v647 = vpop.f32.mrb[0].mxu0
    %648 = vdwg.mxu0
    %v649 = vadd.f32 %v601, %v644
    %v650 = vxor.u32 %v649, 2147483648
    %v651 = vmul.f32 %v650, 1.442695
    %v652 = vpow.pop %v651
    %v653 = vadd.f32 %v652, 1.0
    %v654 = vrcp.pop %v653
    %v655 = vmul.f32 1.0, %v654
    %v656 = vtanh.pop %v649
    %v657 = vmul.f32 %v655, %v493
    %659 = vrot.lane.b32.xlu0 %v656, 32
    %v660 = vpop.permute.xlu0 %659
    %v662 = vmul.f32 %v655, %v660
    %664 = vrot.lane.b32.xlu0 %v662, 32
    %v665 = vpop.permute.xlu0 %664
    %v667 = vadd.f32 %v657, %v665
    %v668 = vtanh.pop %v667
    %670 = vrot.lane.b32.xlu0 %v668, 32
    %v671 = vpop.permute.xlu0 %670
    %v673 = vmul.f32 %v655, %v671
    %s674 = scalar_lea.vmem %s1, 48
    %v675 = vld [vmem:[%s674] sm:$0xff]
    %v676 = vsub.f32 %v673, %v491
    %678 = vset.pattern.permute.xlu0 0
    %679 = vperm.xlu0 %678, %v675
    %v680 = vpop.permute.xlu0 %679
    %v682 = vmul.f32 %v680, %v676
    %v683 = vadd.f32 %v491, %v682
    %v684 = vsub.f32 %v667, %v493
    %v685 = vmul.f32 %v680, %v684
    %v686 = vadd.f32 %v493, %v685
    %v687 = vmul.f32 %v683, %v680
    %689 = vrot.lane.b32.xlu0 %v687, 96
    %v690 = vpop.permute.xlu0 %689
    %s692 = scalar_lea.vmem [#allocation3], 48
    %693 = vst.msk [vmem:[%s692] sm:$0xff] %vm500, %v690
    %s694 = smul.u32 2, 2
    %s695 = smul.addr %s694, 8
    %s696 = scalar_lea.vmem [#allocation2], %s695
    %v697 = vld [vmem:[%s696] sm:$0xff]
    %v698 = vpack.c.bf16 %v587, %v587
    %700 = vrot.lane.b32.xlu0 %v698, 64
    %v701 = vpop.permute.xlu0 %700
    %v703 = vsel %vm192, %v701, 0
    %705 = vmatprep.subr.bf16.mxu0 0
    %706 = vmatpush1.bf16.msra.mxu0 %v314
    %707 = vmatprep.subr.bf16.mxu0 0
    %708 = vmatpush1.bf16.msra.mxu0 %v315
    %709 = vmatprep.subr.bf16.mxu0 0
    %710 = vmatpush1.bf16.msra.mxu0 0
    %711 = vmatprep.subr.bf16.mxu0 0
    %712 = vmatpush1.bf16.msra.mxu0 0
    %713 = vmatprep.subr.bf16.mxu0 0
    %714 = vmatpush1.bf16.msra.mxu0 0
    %715 = vmatprep.subr.bf16.mxu0 0
    %716 = vmatpush1.bf16.msra.mxu0 0
    %717 = vmatprep.subr.bf16.mxu0 0
    %718 = vmatpush1.bf16.msra.mxu0 0
    %719 = vmatprep.subr.bf16.mxu0 0
    %720 = vmatpush1.bf16.msra.mxu0 0
    %721 = vmatprep.subr.bf16.mxu0 0
    %722 = vmatpush1.bf16.msra.mxu0 0
    %723 = vmatprep.subr.bf16.mxu0 0
    %724 = vmatpush1.bf16.msra.mxu0 0
    %725 = vmatprep.subr.bf16.mxu0 0
    %726 = vmatpush1.bf16.msra.mxu0 0
    %727 = vmatprep.subr.bf16.mxu0 0
    %728 = vmatpush1.bf16.msra.mxu0 0
    %729 = vmatprep.subr.bf16.mxu0 0
    %730 = vmatpush1.bf16.msra.mxu0 0
    %731 = vmatprep.subr.bf16.mxu0 0
    %732 = vmatpush1.bf16.msra.mxu0 0
    %733 = vmatprep.subr.bf16.mxu0 0
    %734 = vmatpush1.bf16.msra.mxu0 0
    %735 = vmatprep.subr.bf16.mxu0 0
    %736 = vmatpush1.bf16.msra.mxu0 0
    %737 = vmatprep.mubr.bf16.mxu0 0
    %738 = vmatmul.mubr.bf16.gmra.mrb[0].mxu0 %v703
    %v739 = vpop.f32.mrb[0].mxu0
    %v740 = vadd.f32 0.0, %v739
    %v741 = vpop.f32.mrb[0].mxu0
    %v742 = vpop.f32.mrb[0].mxu0
    %v743 = vpop.f32.mrb[0].mxu0
    %744 = vdwg.mxu0
    %v745 = vadd.f32 %v697, %v740
    %v746 = vxor.u32 %v745, 2147483648
    %v747 = vmul.f32 %v746, 1.442695
    %v748 = vpow.pop %v747
    %v749 = vadd.f32 %v748, 1.0
    %v750 = vrcp.pop %v749
    %v751 = vmul.f32 1.0, %v750
    %v752 = vtanh.pop %v745
    %v753 = vmul.f32 %v751, %v590
    %755 = vrot.lane.b32.xlu0 %v752, 32
    %v756 = vpop.permute.xlu0 %755
    %v758 = vmul.f32 %v751, %v756
    %760 = vrot.lane.b32.xlu0 %v758, 32
    %v761 = vpop.permute.xlu0 %760
    %v763 = vadd.f32 %v753, %v761
    %v764 = vtanh.pop %v763
    %766 = vrot.lane.b32.xlu0 %v764, 32
    %v767 = vpop.permute.xlu0 %766
    %v769 = vmul.f32 %v751, %v767
    %s770 = scalar_lea.vmem %s1, 16
    %v771 = vld [vmem:[%s770] sm:$0xff]
    %v772 = vsub.f32 %v769, %v587
    %774 = vset.pattern.permute.xlu0 0
    %775 = vperm.xlu0 %774, %v771
    %v776 = vpop.permute.xlu0 %775
    %v778 = vmul.f32 %v776, %v772
    %v779 = vadd.f32 %v587, %v778
    %v780 = vsub.f32 %v763, %v590
    %v781 = vmul.f32 %v776, %v780
    %v782 = vadd.f32 %v590, %v781
    %v783 = vmul.f32 %v779, %v776
    %785 = vrot.lane.b32.xlu0 %v783, 64
    %v786 = vpop.permute.xlu0 %785
    %s788 = scalar_lea.vmem [#allocation3], 16
    %789 = vst.msk [vmem:[%s788] sm:$0xff] %vm192, %v786
    %s790 = smul.u32 5, 2
    %s791 = smul.addr %s790, 8
    %s792 = scalar_lea.vmem [#allocation2], %s791
    %v793 = vld [vmem:[%s792 + $0x8] sm:$0xff]
    %v794 = vpack.c.bf16 %v683, %v683
    %796 = vrot.lane.b32.xlu0 %v794, 64
    %v797 = vpop.permute.xlu0 %796
    %v799 = vsel %vm192, %v797, 0
    %801 = vmatprep.subr.bf16.mxu0 0
    %802 = vmatpush1.bf16.msra.mxu0 %v414
    %803 = vmatprep.subr.bf16.mxu0 0
    %804 = vmatpush1.bf16.msra.mxu0 %v415
    %805 = vmatprep.subr.bf16.mxu0 0
    %806 = vmatpush1.bf16.msra.mxu0 0
    %807 = vmatprep.subr.bf16.mxu0 0
    %808 = vmatpush1.bf16.msra.mxu0 0
    %809 = vmatprep.subr.bf16.mxu0 0
    %810 = vmatpush1.bf16.msra.mxu0 0
    %811 = vmatprep.subr.bf16.mxu0 0
    %812 = vmatpush1.bf16.msra.mxu0 0
    %813 = vmatprep.subr.bf16.mxu0 0
    %814 = vmatpush1.bf16.msra.mxu0 0
    %815 = vmatprep.subr.bf16.mxu0 0
    %816 = vmatpush1.bf16.msra.mxu0 0
    %817 = vmatprep.subr.bf16.mxu0 0
    %818 = vmatpush1.bf16.msra.mxu0 0
    %819 = vmatprep.subr.bf16.mxu0 0
    %820 = vmatpush1.bf16.msra.mxu0 0
    %821 = vmatprep.subr.bf16.mxu0 0
    %822 = vmatpush1.bf16.msra.mxu0 0
    %823 = vmatprep.subr.bf16.mxu0 0
    %824 = vmatpush1.bf16.msra.mxu0 0
    %825 = vmatprep.subr.bf16.mxu0 0
    %826 = vmatpush1.bf16.msra.mxu0 0
    %827 = vmatprep.subr.bf16.mxu0 0
    %828 = vmatpush1.bf16.msra.mxu0 0
    %829 = vmatprep.subr.bf16.mxu0 0
    %830 = vmatpush1.bf16.msra.mxu0 0
    %831 = vmatprep.subr.bf16.mxu0 0
    %832 = vmatpush1.bf16.msra.mxu0 0
    %833 = vmatprep.mubr.bf16.mxu0 0
    %834 = vmatmul.mubr.bf16.gmra.mrb[0].mxu0 %v799
    %v835 = vpop.f32.mrb[0].mxu0
    %v836 = vadd.f32 0.0, %v835
    %v837 = vpop.f32.mrb[0].mxu0
    %v838 = vpop.f32.mrb[0].mxu0
    %v839 = vpop.f32.mrb[0].mxu0
    %840 = vdwg.mxu0
    %v841 = vadd.f32 %v793, %v836
    %v842 = vxor.u32 %v841, 2147483648
    %v843 = vmul.f32 %v842, 1.442695
    %v844 = vpow.pop %v843
    %v845 = vadd.f32 %v844, 1.0
    %v846 = vrcp.pop %v845
    %v847 = vmul.f32 1.0, %v846
    %v848 = vtanh.pop %v841
    %v849 = vmul.f32 %v847, %v686
    %851 = vrot.lane.b32.xlu0 %v848, 32
    %v852 = vpop.permute.xlu0 %851
    %v854 = vmul.f32 %v847, %v852
    %856 = vrot.lane.b32.xlu0 %v854, 32
    %v857 = vpop.permute.xlu0 %856
    %v859 = vadd.f32 %v849, %v857
    %v860 = vtanh.pop %v859
    %862 = vrot.lane.b32.xlu0 %v860, 32
    %v863 = vpop.permute.xlu0 %862
    %v865 = vmul.f32 %v847, %v863
    %s866 = scalar_lea.vmem %s1, 40
    %v867 = vld [vmem:[%s866] sm:$0xff]
    %v868 = vsub.f32 %v865, %v683
    %870 = vset.pattern.permute.xlu0 0
    %871 = vperm.xlu0 %870, %v867
    %v872 = vpop.permute.xlu0 %871
    %v874 = vmul.f32 %v872, %v868
    %v875 = vadd.f32 %v683, %v874
    %v876 = vsub.f32 %v859, %v686
    %v877 = vmul.f32 %v872, %v876
    %v878 = vadd.f32 %v686, %v877
    %v879 = vmul.f32 %v875, %v872
    %881 = vrot.lane.b32.xlu0 %v879, 96
    %v882 = vpop.permute.xlu0 %881
    %s884 = scalar_lea.vmem [#allocation3], 40
    %885 = vst.msk [vmem:[%s884] sm:$0xff] %vm500, %v882
    %s886 = smul.u32 3, 2
    %s887 = smul.addr %s886, 8
    %s888 = scalar_lea.vmem [#allocation2], %s887
    %v889 = vld [vmem:[%s888] sm:$0xff]
    %v890 = vpack.c.bf16 %v779, %v779
    %892 = vrot.lane.b32.xlu0 %v890, 64
    %v893 = vpop.permute.xlu0 %892
    %v895 = vsel %vm192, %v893, 0
    %897 = vmatprep.subr.bf16.mxu0 0
    %898 = vmatpush1.bf16.msra.mxu0 %v314
    %899 = vmatprep.subr.bf16.mxu0 0
    %900 = vmatpush1.bf16.msra.mxu0 %v315
    %901 = vmatprep.subr.bf16.mxu0 0
    %902 = vmatpush1.bf16.msra.mxu0 0
    %903 = vmatprep.subr.bf16.mxu0 0
    %904 = vmatpush1.bf16.msra.mxu0 0
    %905 = vmatprep.subr.bf16.mxu0 0
    %906 = vmatpush1.bf16.msra.mxu0 0
    %907 = vmatprep.subr.bf16.mxu0 0
    %908 = vmatpush1.bf16.msra.mxu0 0
    %909 = vmatprep.subr.bf16.mxu0 0
    %910 = vmatpush1.bf16.msra.mxu0 0
    %911 = vmatprep.subr.bf16.mxu0 0
    %912 = vmatpush1.bf16.msra.mxu0 0
    %913 = vmatprep.subr.bf16.mxu0 0
    %914 = vmatpush1.bf16.msra.mxu0 0
    %915 = vmatprep.subr.bf16.mxu0 0
    %916 = vmatpush1.bf16.msra.mxu0 0
    %917 = vmatprep.subr.bf16.mxu0 0
    %918 = vmatpush1.bf16.msra.mxu0 0
    %919 = vmatprep.subr.bf16.mxu0 0
    %920 = vmatpush1.bf16.msra.mxu0 0
    %921 = vmatprep.subr.bf16.mxu0 0
    %922 = vmatpush1.bf16.msra.mxu0 0
    %923 = vmatprep.subr.bf16.mxu0 0
    %924 = vmatpush1.bf16.msra.mxu0 0
    %925 = vmatprep.subr.bf16.mxu0 0
    %926 = vmatpush1.bf16.msra.mxu0 0
    %927 = vmatprep.subr.bf16.mxu0 0
    %928 = vmatpush1.bf16.msra.mxu0 0
    %929 = vmatprep.mubr.bf16.mxu0 0
    %930 = vmatmul.mubr.bf16.gmra.mrb[0].mxu0 %v895
    %v931 = vpop.f32.mrb[0].mxu0
    %v932 = vadd.f32 0.0, %v931
    %v933 = vpop.f32.mrb[0].mxu0
    %v934 = vpop.f32.mrb[0].mxu0
    %v935 = vpop.f32.mrb[0].mxu0
    %936 = vdwg.mxu0
    %v937 = vadd.f32 %v889, %v932
    %v938 = vxor.u32 %v937, 2147483648
    %v939 = vmul.f32 %v938, 1.442695
    %v940 = vpow.pop %v939
    %v941 = vadd.f32 %v940, 1.0
    %v942 = vrcp.pop %v941
    %v943 = vmul.f32 1.0, %v942
    %v944 = vtanh.pop %v937
    %v945 = vmul.f32 %v943, %v782
    %947 = vrot.lane.b32.xlu0 %v944, 32
    %v948 = vpop.permute.xlu0 %947
    %v950 = vmul.f32 %v943, %v948
    %952 = vrot.lane.b32.xlu0 %v950, 32
    %v953 = vpop.permute.xlu0 %952
    %v955 = vadd.f32 %v945, %v953
    %v956 = vtanh.pop %v955
    %958 = vrot.lane.b32.xlu0 %v956, 32
    %v959 = vpop.permute.xlu0 %958
    %v961 = vmul.f32 %v943, %v959
    %s962 = scalar_lea.vmem %s1, 24
    %v963 = vld [vmem:[%s962] sm:$0xff]
    %v964 = vsub.f32 %v961, %v779
    %966 = vset.pattern.permute.xlu0 0
    %967 = vperm.xlu0 %966, %v963
    %v968 = vpop.permute.xlu0 %967
    %v970 = vmul.f32 %v968, %v964
    %v971 = vadd.f32 %v779, %v970
    %v972 = vsub.f32 %v955, %v782
    %v973 = vmul.f32 %v968, %v972
    %v974 = vadd.f32 %v782, %v973
    %v975 = vmul.f32 %v971, %v968
    %977 = vrot.lane.b32.xlu0 %v975, 64
    %v978 = vpop.permute.xlu0 %977
    %s980 = scalar_lea.vmem [#allocation3], 24
    %981 = vst.msk [vmem:[%s980] sm:$0xff] %vm192, %v978
    %s982 = smul.u32 4, 2
    %s983 = smul.addr %s982, 8
    %s984 = scalar_lea.vmem [#allocation2], %s983
    %v985 = vld [vmem:[%s984 + $0x8] sm:$0xff]
    %v986 = vpack.c.bf16 %v875, %v875
    %988 = vrot.lane.b32.xlu0 %v986, 64
    %v989 = vpop.permute.xlu0 %988
    %v991 = vsel %vm192, %v989, 0
    %993 = vmatprep.subr.bf16.mxu0 0
    %994 = vmatpush1.bf16.msra.mxu0 %v414
    %995 = vmatprep.subr.bf16.mxu0 0
    %996 = vmatpush1.bf16.msra.mxu0 %v415
    %997 = vmatprep.subr.bf16.mxu0 0
    %998 = vmatpush1.bf16.msra.mxu0 0
    %999 = vmatprep.subr.bf16.mxu0 0
    %1000 = vmatpush1.bf16.msra.mxu0 0
    %1001 = vmatprep.subr.bf16.mxu0 0
    %1002 = vmatpush1.bf16.msra.mxu0 0
    %1003 = vmatprep.subr.bf16.mxu0 0
    %1004 = vmatpush1.bf16.msra.mxu0 0
    %1005 = vmatprep.subr.bf16.mxu0 0
    %1006 = vmatpush1.bf16.msra.mxu0 0
    %1007 = vmatprep.subr.bf16.mxu0 0
    %1008 = vmatpush1.bf16.msra.mxu0 0
    %1009 = vmatprep.subr.bf16.mxu0 0
    %1010 = vmatpush1.bf16.msra.mxu0 0
    %1011 = vmatprep.subr.bf16.mxu0 0
    %1012 = vmatpush1.bf16.msra.mxu0 0
    %1013 = vmatprep.subr.bf16.mxu0 0
    %1014 = vmatpush1.bf16.msra.mxu0 0
    %1015 = vmatprep.subr.bf16.mxu0 0
    %1016 = vmatpush1.bf16.msra.mxu0 0
    %1017 = vmatprep.subr.bf16.mxu0 0
    %1018 = vmatpush1.bf16.msra.mxu0 0
    %1019 = vmatprep.subr.bf16.mxu0 0
    %1020 = vmatpush1.bf16.msra.mxu0 0
    %1021 = vmatprep.subr.bf16.mxu0 0
    %1022 = vmatpush1.bf16.msra.mxu0 0
    %1023 = vmatprep.subr.bf16.mxu0 0
    %1024 = vmatpush1.bf16.msra.mxu0 0
    %1025 = vmatprep.mubr.bf16.mxu0 0
    %1026 = vmatmul.mubr.bf16.gmra.mrb[0].mxu0 %v991
    %v1027 = vpop.f32.mrb[0].mxu0
    %v1028 = vadd.f32 0.0, %v1027
    %v1029 = vpop.f32.mrb[0].mxu0
    %v1030 = vpop.f32.mrb[0].mxu0
    %v1031 = vpop.f32.mrb[0].mxu0
    %1032 = vdwg.mxu0
    %v1033 = vadd.f32 %v985, %v1028
    %v1034 = vxor.u32 %v1033, 2147483648
    %v1035 = vmul.f32 %v1034, 1.442695
    %v1036 = vpow.pop %v1035
    %v1037 = vadd.f32 %v1036, 1.0
    %v1038 = vrcp.pop %v1037
    %v1039 = vmul.f32 1.0, %v1038
    %v1040 = vtanh.pop %v1033
    %v1041 = vmul.f32 %v1039, %v878
    %1043 = vrot.lane.b32.xlu0 %v1040, 32
    %v1044 = vpop.permute.xlu0 %1043
    %v1046 = vmul.f32 %v1039, %v1044
    %1048 = vrot.lane.b32.xlu0 %v1046, 32
    %v1049 = vpop.permute.xlu0 %1048
    %v1051 = vadd.f32 %v1041, %v1049
    %v1052 = vtanh.pop %v1051
    %1054 = vrot.lane.b32.xlu0 %v1052, 32
    %v1055 = vpop.permute.xlu0 %1054
    %v1057 = vmul.f32 %v1039, %v1055
    %s1058 = scalar_lea.vmem %s1, 32
    %v1059 = vld [vmem:[%s1058] sm:$0xff]
    %v1060 = vsub.f32 %v1057, %v875
    %1062 = vset.pattern.permute.xlu0 0
    %1063 = vperm.xlu0 %1062, %v1059
    %v1064 = vpop.permute.xlu0 %1063
    %v1066 = vmul.f32 %v1064, %v1060
    %v1067 = vadd.f32 %v875, %v1066
    %v1068 = vsub.f32 %v1051, %v878
    %v1069 = vmul.f32 %v1064, %v1068
    %v1070 = vadd.f32 %v878, %v1069
    %v1071 = vmul.f32 %v1067, %v1064
    %1073 = vrot.lane.b32.xlu0 %v1071, 96
    %v1074 = vpop.permute.xlu0 %1073
    %s1076 = scalar_lea.vmem [#allocation3], 32
    %1077 = vst.msk [vmem:[%s1076] sm:$0xff] %vm500, %v1074
    %v1078 = vld [vmem:[%s984] sm:$0xff]
    %v1079 = vpack.c.bf16 %v971, %v971
    %1081 = vrot.lane.b32.xlu0 %v1079, 64
    %v1082 = vpop.permute.xlu0 %1081
    %v1084 = vsel %vm192, %v1082, 0
    %1086 = vmatprep.subr.bf16.mxu0 0
    %1087 = vmatpush1.bf16.msra.mxu0 %v314
    %1088 = vmatprep.subr.bf16.mxu0 0
    %1089 = vmatpush1.bf16.msra.mxu0 %v315
    %1090 = vmatprep.subr.bf16.mxu0 0
    %1091 = vmatpush1.bf16.msra.mxu0 0
    %1092 = vmatprep.subr.bf16.mxu0 0
    %1093 = vmatpush1.bf16.msra.mxu0 0
    %1094 = vmatprep.subr.bf16.mxu0 0
    %1095 = vmatpush1.bf16.msra.mxu0 0
    %1096 = vmatprep.subr.bf16.mxu0 0
    %1097 = vmatpush1.bf16.msra.mxu0 0
    %1098 = vmatprep.subr.bf16.mxu0 0
    %1099 = vmatpush1.bf16.msra.mxu0 0
    %1100 = vmatprep.subr.bf16.mxu0 0
    %1101 = vmatpush1.bf16.msra.mxu0 0
    %1102 = vmatprep.subr.bf16.mxu0 0
    %1103 = vmatpush1.bf16.msra.mxu0 0
    %1104 = vmatprep.subr.bf16.mxu0 0
    %1105 = vmatpush1.bf16.msra.mxu0 0
    %1106 = vmatprep.subr.bf16.mxu0 0
    %1107 = vmatpush1.bf16.msra.mxu0 0
    %1108 = vmatprep.subr.bf16.mxu0 0
    %1109 = vmatpush1.bf16.msra.mxu0 0
    %1110 = vmatprep.subr.bf16.mxu0 0
    %1111 = vmatpush1.bf16.msra.mxu0 0
    %1112 = vmatprep.subr.bf16.mxu0 0
    %1113 = vmatpush1.bf16.msra.mxu0 0
    %1114 = vmatprep.subr.bf16.mxu0 0
    %1115 = vmatpush1.bf16.msra.mxu0 0
    %1116 = vmatprep.subr.bf16.mxu0 0
    %1117 = vmatpush1.bf16.msra.mxu0 0
    %1118 = vmatprep.mubr.bf16.mxu0 0
    %1119 = vmatmul.mubr.bf16.gmra.mrb[0].mxu0 %v1084
    %v1120 = vpop.f32.mrb[0].mxu0
    %v1121 = vadd.f32 0.0, %v1120
    %v1122 = vpop.f32.mrb[0].mxu0
    %v1123 = vpop.f32.mrb[0].mxu0
    %v1124 = vpop.f32.mrb[0].mxu0
    %1125 = vdwg.mxu0
    %v1126 = vadd.f32 %v1078, %v1121
    %v1127 = vxor.u32 %v1126, 2147483648
    %v1128 = vmul.f32 %v1127, 1.442695
    %v1129 = vpow.pop %v1128
    %v1130 = vadd.f32 %v1129, 1.0
    %v1131 = vrcp.pop %v1130
    %v1132 = vmul.f32 1.0, %v1131
    %v1133 = vtanh.pop %v1126
    %v1134 = vmul.f32 %v1132, %v974
    %1136 = vrot.lane.b32.xlu0 %v1133, 32
    %v1137 = vpop.permute.xlu0 %1136
    %v1139 = vmul.f32 %v1132, %v1137
    %1141 = vrot.lane.b32.xlu0 %v1139, 32
    %v1142 = vpop.permute.xlu0 %1141
    %v1144 = vadd.f32 %v1134, %v1142
    %v1145 = vtanh.pop %v1144
    %1147 = vrot.lane.b32.xlu0 %v1145, 32
    %v1148 = vpop.permute.xlu0 %1147
    %v1150 = vmul.f32 %v1132, %v1148
    %v1151 = vld [vmem:[%s1058] sm:$0xff]
    %v1152 = vsub.f32 %v1150, %v971
    %1154 = vset.pattern.permute.xlu0 0
    %1155 = vperm.xlu0 %1154, %v1151
    %v1156 = vpop.permute.xlu0 %1155
    %v1158 = vmul.f32 %v1156, %v1152
    %v1159 = vadd.f32 %v971, %v1158
    %v1160 = vsub.f32 %v1144, %v974
    %v1161 = vmul.f32 %v1156, %v1160
    %v1162 = vadd.f32 %v974, %v1161
    %v1163 = vmul.f32 %v1159, %v1156
    %1165 = vrot.lane.b32.xlu0 %v1163, 64
    %v1166 = vpop.permute.xlu0 %1165
    %1168 = vst.msk [vmem:[%s1076] sm:$0xff] %vm192, %v1166
    %v1169 = vld [vmem:[%s888 + $0x8] sm:$0xff]
    %v1170 = vpack.c.bf16 %v1067, %v1067
    %1172 = vrot.lane.b32.xlu0 %v1170, 64
    %v1173 = vpop.permute.xlu0 %1172
    %v1175 = vsel %vm192, %v1173, 0
    %1177 = vmatprep.subr.bf16.mxu0 0
    %1178 = vmatpush1.bf16.msra.mxu0 %v414
    %1179 = vmatprep.subr.bf16.mxu0 0
    %1180 = vmatpush1.bf16.msra.mxu0 %v415
    %1181 = vmatprep.subr.bf16.mxu0 0
    %1182 = vmatpush1.bf16.msra.mxu0 0
    %1183 = vmatprep.subr.bf16.mxu0 0
    %1184 = vmatpush1.bf16.msra.mxu0 0
    %1185 = vmatprep.subr.bf16.mxu0 0
    %1186 = vmatpush1.bf16.msra.mxu0 0
    %1187 = vmatprep.subr.bf16.mxu0 0
    %1188 = vmatpush1.bf16.msra.mxu0 0
    %1189 = vmatprep.subr.bf16.mxu0 0
    %1190 = vmatpush1.bf16.msra.mxu0 0
    %1191 = vmatprep.subr.bf16.mxu0 0
    %1192 = vmatpush1.bf16.msra.mxu0 0
    %1193 = vmatprep.subr.bf16.mxu0 0
    %1194 = vmatpush1.bf16.msra.mxu0 0
    %1195 = vmatprep.subr.bf16.mxu0 0
    %1196 = vmatpush1.bf16.msra.mxu0 0
    %1197 = vmatprep.subr.bf16.mxu0 0
    %1198 = vmatpush1.bf16.msra.mxu0 0
    %1199 = vmatprep.subr.bf16.mxu0 0
    %1200 = vmatpush1.bf16.msra.mxu0 0
    %1201 = vmatprep.subr.bf16.mxu0 0
    %1202 = vmatpush1.bf16.msra.mxu0 0
    %1203 = vmatprep.subr.bf16.mxu0 0
    %1204 = vmatpush1.bf16.msra.mxu0 0
    %1205 = vmatprep.subr.bf16.mxu0 0
    %1206 = vmatpush1.bf16.msra.mxu0 0
    %1207 = vmatprep.subr.bf16.mxu0 0
    %1208 = vmatpush1.bf16.msra.mxu0 0
    %1209 = vmatprep.mubr.bf16.mxu0 0
    %1210 = vmatmul.mubr.bf16.gmra.mrb[0].mxu0 %v1175
    %v1211 = vpop.f32.mrb[0].mxu0
    %v1212 = vadd.f32 0.0, %v1211
    %v1213 = vpop.f32.mrb[0].mxu0
    %v1214 = vpop.f32.mrb[0].mxu0
    %v1215 = vpop.f32.mrb[0].mxu0
    %1216 = vdwg.mxu0
    %v1217 = vadd.f32 %v1169, %v1212
    %v1218 = vxor.u32 %v1217, 2147483648
    %v1219 = vmul.f32 %v1218, 1.442695
    %v1220 = vpow.pop %v1219
    %v1221 = vadd.f32 %v1220, 1.0
    %v1222 = vrcp.pop %v1221
    %v1223 = vmul.f32 1.0, %v1222
    %v1224 = vtanh.pop %v1217
    %v1225 = vmul.f32 %v1223, %v1070
    %1227 = vrot.lane.b32.xlu0 %v1224, 32
    %v1228 = vpop.permute.xlu0 %1227
    %v1230 = vmul.f32 %v1223, %v1228
    %1232 = vrot.lane.b32.xlu0 %v1230, 32
    %v1233 = vpop.permute.xlu0 %1232
    %v1235 = vadd.f32 %v1225, %v1233
    %v1236 = vtanh.pop %v1235
    %1238 = vrot.lane.b32.xlu0 %v1236, 32
    %v1239 = vpop.permute.xlu0 %1238
    %v1241 = vmul.f32 %v1223, %v1239
    %v1242 = vld [vmem:[%s962] sm:$0xff]
    %v1243 = vsub.f32 %v1241, %v1067
    %1245 = vset.pattern.permute.xlu0 0
    %1246 = vperm.xlu0 %1245, %v1242
    %v1247 = vpop.permute.xlu0 %1246
    %v1249 = vmul.f32 %v1247, %v1243
    %v1250 = vadd.f32 %v1067, %v1249
    %v1251 = vsub.f32 %v1235, %v1070
    %v1252 = vmul.f32 %v1247, %v1251
    %v1253 = vadd.f32 %v1070, %v1252
    %v1254 = vmul.f32 %v1250, %v1247
    %1256 = vrot.lane.b32.xlu0 %v1254, 96
    %v1257 = vpop.permute.xlu0 %1256
    %1259 = vst.msk [vmem:[%s980] sm:$0xff] %vm500, %v1257
    %v1260 = vld [vmem:[%s792] sm:$0xff]
    %v1261 = vpack.c.bf16 %v1159, %v1159
    %1263 = vrot.lane.b32.xlu0 %v1261, 64
    %v1264 = vpop.permute.xlu0 %1263
    %v1266 = vsel %vm192, %v1264, 0
    %1268 = vmatprep.subr.bf16.mxu0 0
    %1269 = vmatpush1.bf16.msra.mxu0 %v314
    %1270 = vmatprep.subr.bf16.mxu0 0
    %1271 = vmatpush1.bf16.msra.mxu0 %v315
    %1272 = vmatprep.subr.bf16.mxu0 0
    %1273 = vmatpush1.bf16.msra.mxu0 0
    %1274 = vmatprep.subr.bf16.mxu0 0
    %1275 = vmatpush1.bf16.msra.mxu0 0
    %1276 = vmatprep.subr.bf16.mxu0 0
    %1277 = vmatpush1.bf16.msra.mxu0 0
    %1278 = vmatprep.subr.bf16.mxu0 0
    %1279 = vmatpush1.bf16.msra.mxu0 0
    %1280 = vmatprep.subr.bf16.mxu0 0
    %1281 = vmatpush1.bf16.msra.mxu0 0
    %1282 = vmatprep.subr.bf16.mxu0 0
    %1283 = vmatpush1.bf16.msra.mxu0 0
    %1284 = vmatprep.subr.bf16.mxu0 0
    %1285 = vmatpush1.bf16.msra.mxu0 0
    %1286 = vmatprep.subr.bf16.mxu0 0
    %1287 = vmatpush1.bf16.msra.mxu0 0
    %1288 = vmatprep.subr.bf16.mxu0 0
    %1289 = vmatpush1.bf16.msra.mxu0 0
    %1290 = vmatprep.subr.bf16.mxu0 0
    %1291 = vmatpush1.bf16.msra.mxu0 0
    %1292 = vmatprep.subr.bf16.mxu0 0
    %1293 = vmatpush1.bf16.msra.mxu0 0
    %1294 = vmatprep.subr.bf16.mxu0 0
    %1295 = vmatpush1.bf16.msra.mxu0 0
    %1296 = vmatprep.subr.bf16.mxu0 0
    %1297 = vmatpush1.bf16.msra.mxu0 0
    %1298 = vmatprep.subr.bf16.mxu0 0
    %1299 = vmatpush1.bf16.msra.mxu0 0
    %1300 = vmatprep.mubr.bf16.mxu0 0
    %1301 = vmatmul.mubr.bf16.gmra.mrb[0].mxu0 %v1266
    %v1302 = vpop.f32.mrb[0].mxu0
    %v1303 = vadd.f32 0.0, %v1302
    %v1304 = vpop.f32.mrb[0].mxu0
    %v1305 = vpop.f32.mrb[0].mxu0
    %v1306 = vpop.f32.mrb[0].mxu0
    %1307 = vdwg.mxu0
    %v1308 = vadd.f32 %v1260, %v1303
    %v1309 = vxor.u32 %v1308, 2147483648
    %v1310 = vmul.f32 %v1309, 1.442695
    %v1311 = vpow.pop %v1310
    %v1312 = vadd.f32 %v1311, 1.0
    %v1313 = vrcp.pop %v1312
    %v1314 = vmul.f32 1.0, %v1313
    %v1315 = vtanh.pop %v1308
    %v1316 = vmul.f32 %v1314, %v1162
    %1318 = vrot.lane.b32.xlu0 %v1315, 32
    %v1319 = vpop.permute.xlu0 %1318
    %v1321 = vmul.f32 %v1314, %v1319
    %1323 = vrot.lane.b32.xlu0 %v1321, 32
    %v1324 = vpop.permute.xlu0 %1323
    %v1326 = vadd.f32 %v1316, %v1324
    %v1327 = vtanh.pop %v1326
    %1329 = vrot.lane.b32.xlu0 %v1327, 32
    %v1330 = vpop.permute.xlu0 %1329
    %v1332 = vmul.f32 %v1314, %v1330
    %v1333 = vld [vmem:[%s866] sm:$0xff]
    %v1334 = vsub.f32 %v1332, %v1159
    %1336 = vset.pattern.permute.xlu0 0
    %1337 = vperm.xlu0 %1336, %v1333
    %v1338 = vpop.permute.xlu0 %1337
    %v1340 = vmul.f32 %v1338, %v1334
    %v1341 = vadd.f32 %v1159, %v1340
    %v1342 = vsub.f32 %v1326, %v1162
    %v1343 = vmul.f32 %v1338, %v1342
    %v1344 = vadd.f32 %v1162, %v1343
    %v1345 = vmul.f32 %v1341, %v1338
    %1347 = vrot.lane.b32.xlu0 %v1345, 64
    %v1348 = vpop.permute.xlu0 %1347
    %1350 = vst.msk [vmem:[%s884] sm:$0xff] %vm192, %v1348
    %v1351 = vld [vmem:[%s696 + $0x8] sm:$0xff]
    %v1352 = vpack.c.bf16 %v1250, %v1250
    %1354 = vrot.lane.b32.xlu0 %v1352, 64
    %v1355 = vpop.permute.xlu0 %1354
    %v1357 = vsel %vm192, %v1355, 0
    %1359 = vmatprep.subr.bf16.mxu0 0
    %1360 = vmatpush1.bf16.msra.mxu0 %v414
    %1361 = vmatprep.subr.bf16.mxu0 0
    %1362 = vmatpush1.bf16.msra.mxu0 %v415
    %1363 = vmatprep.subr.bf16.mxu0 0
    %1364 = vmatpush1.bf16.msra.mxu0 0
    %1365 = vmatprep.subr.bf16.mxu0 0
    %1366 = vmatpush1.bf16.msra.mxu0 0
    %1367 = vmatprep.subr.bf16.mxu0 0
    %1368 = vmatpush1.bf16.msra.mxu0 0
    %1369 = vmatprep.subr.bf16.mxu0 0
    %1370 = vmatpush1.bf16.msra.mxu0 0
    %1371 = vmatprep.subr.bf16.mxu0 0
    %1372 = vmatpush1.bf16.msra.mxu0 0
    %1373 = vmatprep.subr.bf16.mxu0 0
    %1374 = vmatpush1.bf16.msra.mxu0 0
    %1375 = vmatprep.subr.bf16.mxu0 0
    %1376 = vmatpush1.bf16.msra.mxu0 0
    %1377 = vmatprep.subr.bf16.mxu0 0
    %1378 = vmatpush1.bf16.msra.mxu0 0
    %1379 = vmatprep.subr.bf16.mxu0 0
    %1380 = vmatpush1.bf16.msra.mxu0 0
    %1381 = vmatprep.subr.bf16.mxu0 0
    %1382 = vmatpush1.bf16.msra.mxu0 0
    %1383 = vmatprep.subr.bf16.mxu0 0
    %1384 = vmatpush1.bf16.msra.mxu0 0
    %1385 = vmatprep.subr.bf16.mxu0 0
    %1386 = vmatpush1.bf16.msra.mxu0 0
    %1387 = vmatprep.subr.bf16.mxu0 0
    %1388 = vmatpush1.bf16.msra.mxu0 0
    %1389 = vmatprep.subr.bf16.mxu0 0
    %1390 = vmatpush1.bf16.msra.mxu0 0
    %1391 = vmatprep.mubr.bf16.mxu0 0
    %1392 = vmatmul.mubr.bf16.gmra.mrb[0].mxu0 %v1357
    %v1393 = vpop.f32.mrb[0].mxu0
    %v1394 = vadd.f32 0.0, %v1393
    %v1395 = vpop.f32.mrb[0].mxu0
    %v1396 = vpop.f32.mrb[0].mxu0
    %v1397 = vpop.f32.mrb[0].mxu0
    %1398 = vdwg.mxu0
    %v1399 = vadd.f32 %v1351, %v1394
    %v1400 = vxor.u32 %v1399, 2147483648
    %v1401 = vmul.f32 %v1400, 1.442695
    %v1402 = vpow.pop %v1401
    %v1403 = vadd.f32 %v1402, 1.0
    %v1404 = vrcp.pop %v1403
    %v1405 = vmul.f32 1.0, %v1404
    %v1406 = vtanh.pop %v1399
    %v1407 = vmul.f32 %v1405, %v1253
    %1409 = vrot.lane.b32.xlu0 %v1406, 32
    %v1410 = vpop.permute.xlu0 %1409
    %v1412 = vmul.f32 %v1405, %v1410
    %1414 = vrot.lane.b32.xlu0 %v1412, 32
    %v1415 = vpop.permute.xlu0 %1414
    %v1417 = vadd.f32 %v1407, %v1415
    %v1418 = vtanh.pop %v1417
    %1420 = vrot.lane.b32.xlu0 %v1418, 32
    %v1421 = vpop.permute.xlu0 %1420
    %v1423 = vmul.f32 %v1405, %v1421
    %v1424 = vld [vmem:[%s770] sm:$0xff]
    %v1425 = vsub.f32 %v1423, %v1250
    %1427 = vset.pattern.permute.xlu0 0
    %1428 = vperm.xlu0 %1427, %v1424
    %v1429 = vpop.permute.xlu0 %1428
    %v1431 = vmul.f32 %v1429, %v1425
    %v1432 = vadd.f32 %v1250, %v1431
    %v1433 = vsub.f32 %v1417, %v1253
    %v1434 = vmul.f32 %v1429, %v1433
    %v1435 = vadd.f32 %v1253, %v1434
    %v1436 = vmul.f32 %v1432, %v1429
    %1438 = vrot.lane.b32.xlu0 %v1436, 96
    %v1439 = vpop.permute.xlu0 %1438
    %1441 = vst.msk [vmem:[%s788] sm:$0xff] %vm500, %v1439
    %v1442 = vld [vmem:[%s600] sm:$0xff]
    %v1443 = vpack.c.bf16 %v1341, %v1341
    %1445 = vrot.lane.b32.xlu0 %v1443, 64
    %v1446 = vpop.permute.xlu0 %1445
    %v1448 = vsel %vm192, %v1446, 0
    %1450 = vmatprep.subr.bf16.mxu0 0
    %1451 = vmatpush1.bf16.msra.mxu0 %v314
    %1452 = vmatprep.subr.bf16.mxu0 0
    %1453 = vmatpush1.bf16.msra.mxu0 %v315
    %1454 = vmatprep.subr.bf16.mxu0 0
    %1455 = vmatpush1.bf16.msra.mxu0 0
    %1456 = vmatprep.subr.bf16.mxu0 0
    %1457 = vmatpush1.bf16.msra.mxu0 0
    %1458 = vmatprep.subr.bf16.mxu0 0
    %1459 = vmatpush1.bf16.msra.mxu0 0
    %1460 = vmatprep.subr.bf16.mxu0 0
    %1461 = vmatpush1.bf16.msra.mxu0 0
    %1462 = vmatprep.subr.bf16.mxu0 0
    %1463 = vmatpush1.bf16.msra.mxu0 0
    %1464 = vmatprep.subr.bf16.mxu0 0
    %1465 = vmatpush1.bf16.msra.mxu0 0
    %1466 = vmatprep.subr.bf16.mxu0 0
    %1467 = vmatpush1.bf16.msra.mxu0 0
    %1468 = vmatprep.subr.bf16.mxu0 0
    %1469 = vmatpush1.bf16.msra.mxu0 0
    %1470 = vmatprep.subr.bf16.mxu0 0
    %1471 = vmatpush1.bf16.msra.mxu0 0
    %1472 = vmatprep.subr.bf16.mxu0 0
    %1473 = vmatpush1.bf16.msra.mxu0 0
    %1474 = vmatprep.subr.bf16.mxu0 0
    %1475 = vmatpush1.bf16.msra.mxu0 0
    %1476 = vmatprep.subr.bf16.mxu0 0
    %1477 = vmatpush1.bf16.msra.mxu0 0
    %1478 = vmatprep.subr.bf16.mxu0 0
    %1479 = vmatpush1.bf16.msra.mxu0 0
    %1480 = vmatprep.subr.bf16.mxu0 0
    %1481 = vmatpush1.bf16.msra.mxu0 0
    %1482 = vmatprep.mubr.bf16.mxu0 0
    %1483 = vmatmul.mubr.bf16.gmra.mrb[0].mxu0 %v1448
    %v1484 = vpop.f32.mrb[0].mxu0
    %v1485 = vadd.f32 0.0, %v1484
    %v1486 = vpop.f32.mrb[0].mxu0
    %v1487 = vpop.f32.mrb[0].mxu0
    %v1488 = vpop.f32.mrb[0].mxu0
    %1489 = vdwg.mxu0
    %v1490 = vadd.f32 %v1442, %v1485
    %v1491 = vxor.u32 %v1490, 2147483648
    %v1492 = vmul.f32 %v1491, 1.442695
    %v1493 = vpow.pop %v1492
    %v1494 = vadd.f32 %v1493, 1.0
    %v1495 = vrcp.pop %v1494
    %v1496 = vmul.f32 1.0, %v1495
    %v1497 = vtanh.pop %v1490
    %v1498 = vmul.f32 %v1496, %v1344
    %1500 = vrot.lane.b32.xlu0 %v1497, 32
    %v1501 = vpop.permute.xlu0 %1500
    %v1503 = vmul.f32 %v1496, %v1501
    %1505 = vrot.lane.b32.xlu0 %v1503, 32
    %v1506 = vpop.permute.xlu0 %1505
    %v1508 = vadd.f32 %v1498, %v1506
    %v1509 = vtanh.pop %v1508
    %1511 = vrot.lane.b32.xlu0 %v1509, 32
    %v1512 = vpop.permute.xlu0 %1511
    %v1514 = vmul.f32 %v1496, %v1512
    %v1515 = vld [vmem:[%s674] sm:$0xff]
    %v1516 = vsub.f32 %v1514, %v1341
    %1518 = vset.pattern.permute.xlu0 0
    %1519 = vperm.xlu0 %1518, %v1515
    %v1520 = vpop.permute.xlu0 %1519
    %v1522 = vmul.f32 %v1520, %v1516
    %v1523 = vadd.f32 %v1341, %v1522
    %v1524 = vsub.f32 %v1508, %v1344
    %v1525 = vmul.f32 %v1520, %v1524
    %v1526 = vadd.f32 %v1344, %v1525
    %v1527 = vmul.f32 %v1523, %v1520
    %1529 = vrot.lane.b32.xlu0 %v1527, 64
    %v1530 = vpop.permute.xlu0 %1529
    %1532 = vst.msk [vmem:[%s692] sm:$0xff] %vm192, %v1530
    %v1533 = vld [vmem:[%s504 + $0x8] sm:$0xff]
    %v1534 = vpack.c.bf16 %v1432, %v1432
    %1536 = vrot.lane.b32.xlu0 %v1534, 64
    %v1537 = vpop.permute.xlu0 %1536
    %v1539 = vsel %vm192, %v1537, 0
    %1541 = vmatprep.subr.bf16.mxu0 0
    %1542 = vmatpush1.bf16.msra.mxu0 %v414
    %1543 = vmatprep.subr.bf16.mxu0 0
    %1544 = vmatpush1.bf16.msra.mxu0 %v415
    %1545 = vmatprep.subr.bf16.mxu0 0
    %1546 = vmatpush1.bf16.msra.mxu0 0
    %1547 = vmatprep.subr.bf16.mxu0 0
    %1548 = vmatpush1.bf16.msra.mxu0 0
    %1549 = vmatprep.subr.bf16.mxu0 0
    %1550 = vmatpush1.bf16.msra.mxu0 0
    %1551 = vmatprep.subr.bf16.mxu0 0
    %1552 = vmatpush1.bf16.msra.mxu0 0
    %1553 = vmatprep.subr.bf16.mxu0 0
    %1554 = vmatpush1.bf16.msra.mxu0 0
    %1555 = vmatprep.subr.bf16.mxu0 0
    %1556 = vmatpush1.bf16.msra.mxu0 0
    %1557 = vmatprep.subr.bf16.mxu0 0
    %1558 = vmatpush1.bf16.msra.mxu0 0
    %1559 = vmatprep.subr.bf16.mxu0 0
    %1560 = vmatpush1.bf16.msra.mxu0 0
    %1561 = vmatprep.subr.bf16.mxu0 0
    %1562 = vmatpush1.bf16.msra.mxu0 0
    %1563 = vmatprep.subr.bf16.mxu0 0
    %1564 = vmatpush1.bf16.msra.mxu0 0
    %1565 = vmatprep.subr.bf16.mxu0 0
    %1566 = vmatpush1.bf16.msra.mxu0 0
    %1567 = vmatprep.subr.bf16.mxu0 0
    %1568 = vmatpush1.bf16.msra.mxu0 0
    %1569 = vmatprep.subr.bf16.mxu0 0
    %1570 = vmatpush1.bf16.msra.mxu0 0
    %1571 = vmatprep.subr.bf16.mxu0 0
    %1572 = vmatpush1.bf16.msra.mxu0 0
    %1573 = vmatprep.mubr.bf16.mxu0 0
    %1574 = vmatmul.mubr.bf16.gmra.mrb[0].mxu0 %v1539
    %v1575 = vpop.f32.mrb[0].mxu0
    %v1576 = vadd.f32 0.0, %v1575
    %v1577 = vpop.f32.mrb[0].mxu0
    %v1578 = vpop.f32.mrb[0].mxu0
    %v1579 = vpop.f32.mrb[0].mxu0
    %1580 = vdwg.mxu0
    %v1581 = vadd.f32 %v1533, %v1576
    %v1582 = vxor.u32 %v1581, 2147483648
    %v1583 = vmul.f32 %v1582, 1.442695
    %v1584 = vpow.pop %v1583
    %v1585 = vadd.f32 %v1584, 1.0
    %v1586 = vrcp.pop %v1585
    %v1587 = vmul.f32 1.0, %v1586
    %v1588 = vtanh.pop %v1581
    %v1589 = vmul.f32 %v1587, %v1435
    %1591 = vrot.lane.b32.xlu0 %v1588, 32
    %v1592 = vpop.permute.xlu0 %1591
    %v1594 = vmul.f32 %v1587, %v1592
    %1596 = vrot.lane.b32.xlu0 %v1594, 32
    %v1597 = vpop.permute.xlu0 %1596
    %v1599 = vadd.f32 %v1589, %v1597
    %v1600 = vtanh.pop %v1599
    %1602 = vrot.lane.b32.xlu0 %v1600, 32
    %v1603 = vpop.permute.xlu0 %1602
    %v1605 = vmul.f32 %v1587, %v1603
    %v1606 = vld [vmem:[%s578] sm:$0xff]
    %v1607 = vsub.f32 %v1605, %v1432
    %1609 = vset.pattern.permute.xlu0 0
    %1610 = vperm.xlu0 %1609, %v1606
    %v1611 = vpop.permute.xlu0 %1610
    %v1613 = vmul.f32 %v1611, %v1607
    %v1614 = vadd.f32 %v1432, %v1613
    %v1615 = vsub.f32 %v1599, %v1435
    %v1616 = vmul.f32 %v1611, %v1615
    %v1617 = vadd.f32 %v1435, %v1616
    %v1618 = vmul.f32 %v1614, %v1611
    %1620 = vrot.lane.b32.xlu0 %v1618, 96
    %v1621 = vpop.permute.xlu0 %1620
    %1623 = vst.msk [vmem:[%s596] sm:$0xff] %vm500, %v1621
    %v1624 = vld [vmem:[%s404] sm:$0xff]
    %v1625 = vpack.c.bf16 %v1523, %v1523
    %1627 = vrot.lane.b32.xlu0 %v1625, 64
    %v1628 = vpop.permute.xlu0 %1627
    %v1630 = vsel %vm192, %v1628, 0
    %1632 = vmatprep.subr.bf16.mxu0 0
    %1633 = vmatpush1.bf16.msra.mxu0 %v314
    %1634 = vmatprep.subr.bf16.mxu0 0
    %1635 = vmatpush1.bf16.msra.mxu0 %v315
    %1636 = vmatprep.subr.bf16.mxu0 0
    %1637 = vmatpush1.bf16.msra.mxu0 0
    %1638 = vmatprep.subr.bf16.mxu0 0
    %1639 = vmatpush1.bf16.msra.mxu0 0
    %1640 = vmatprep.subr.bf16.mxu0 0
    %1641 = vmatpush1.bf16.msra.mxu0 0
    %1642 = vmatprep.subr.bf16.mxu0 0
    %1643 = vmatpush1.bf16.msra.mxu0 0
    %1644 = vmatprep.subr.bf16.mxu0 0
    %1645 = vmatpush1.bf16.msra.mxu0 0
    %1646 = vmatprep.subr.bf16.mxu0 0
    %1647 = vmatpush1.bf16.msra.mxu0 0
    %1648 = vmatprep.subr.bf16.mxu0 0
    %1649 = vmatpush1.bf16.msra.mxu0 0
    %1650 = vmatprep.subr.bf16.mxu0 0
    %1651 = vmatpush1.bf16.msra.mxu0 0
    %1652 = vmatprep.subr.bf16.mxu0 0
    %1653 = vmatpush1.bf16.msra.mxu0 0
    %1654 = vmatprep.subr.bf16.mxu0 0
    %1655 = vmatpush1.bf16.msra.mxu0 0
    %1656 = vmatprep.subr.bf16.mxu0 0
    %1657 = vmatpush1.bf16.msra.mxu0 0
    %1658 = vmatprep.subr.bf16.mxu0 0
    %1659 = vmatpush1.bf16.msra.mxu0 0
    %1660 = vmatprep.subr.bf16.mxu0 0
    %1661 = vmatpush1.bf16.msra.mxu0 0
    %1662 = vmatprep.subr.bf16.mxu0 0
    %1663 = vmatpush1.bf16.msra.mxu0 0
    %1664 = vmatprep.mubr.bf16.mxu0 0
    %1665 = vmatmul.mubr.bf16.gmra.mrb[0].mxu0 %v1630
    %v1666 = vpop.f32.mrb[0].mxu0
    %v1667 = vadd.f32 0.0, %v1666
    %v1668 = vpop.f32.mrb[0].mxu0
    %v1669 = vpop.f32.mrb[0].mxu0
    %v1670 = vpop.f32.mrb[0].mxu0
    %1671 = vdwg.mxu0
    %v1672 = vadd.f32 %v1624, %v1667
    %v1673 = vxor.u32 %v1672, 2147483648
    %v1674 = vmul.f32 %v1673, 1.442695
    %v1675 = vpow.pop %v1674
    %v1676 = vadd.f32 %v1675, 1.0
    %v1677 = vrcp.pop %v1676
    %v1678 = vmul.f32 1.0, %v1677
    %v1679 = vtanh.pop %v1672
    %v1680 = vmul.f32 %v1678, %v1526
    %1682 = vrot.lane.b32.xlu0 %v1679, 32
    %v1683 = vpop.permute.xlu0 %1682
    %v1685 = vmul.f32 %v1678, %v1683
    %1687 = vrot.lane.b32.xlu0 %v1685, 32
    %v1688 = vpop.permute.xlu0 %1687
    %v1690 = vadd.f32 %v1680, %v1688
    %v1691 = vtanh.pop %v1690
    %1693 = vrot.lane.b32.xlu0 %v1691, 32
    %v1694 = vpop.permute.xlu0 %1693
    %v1696 = vmul.f32 %v1678, %v1694
    %v1697 = vld [vmem:[%s483] sm:$0xff]
    %v1698 = vsub.f32 %v1696, %v1523
    %1700 = vset.pattern.permute.xlu0 0
    %1701 = vperm.xlu0 %1700, %v1697
    %v1702 = vpop.permute.xlu0 %1701
    %v1704 = vmul.f32 %v1702, %v1698
    %v1705 = vadd.f32 %v1523, %v1704
    %v1706 = vmul.f32 %v1705, %v1702
    %1708 = vrot.lane.b32.xlu0 %v1706, 64
    %v1709 = vpop.permute.xlu0 %1708
    %1711 = vst.msk [vmem:[%s499] sm:$0xff] %vm192, %v1709
    %v1712 = vld [vmem:[%s304 + $0x8] sm:$0xff]
    %v1713 = vpack.c.bf16 %v1614, %v1614
    %1715 = vrot.lane.b32.xlu0 %v1713, 64
    %v1716 = vpop.permute.xlu0 %1715
    %v1718 = vsel %vm192, %v1716, 0
    %1720 = vmatprep.subr.bf16.mxu0 0
    %1721 = vmatpush1.bf16.msra.mxu0 %v414
    %1722 = vmatprep.subr.bf16.mxu0 0
    %1723 = vmatpush1.bf16.msra.mxu0 %v415
    %1724 = vmatprep.subr.bf16.mxu0 0
    %1725 = vmatpush1.bf16.msra.mxu0 0
    %1726 = vmatprep.subr.bf16.mxu0 0
    %1727 = vmatpush1.bf16.msra.mxu0 0
    %1728 = vmatprep.subr.bf16.mxu0 0
    %1729 = vmatpush1.bf16.msra.mxu0 0
    %1730 = vmatprep.subr.bf16.mxu0 0
    %1731 = vmatpush1.bf16.msra.mxu0 0
    %1732 = vmatprep.subr.bf16.mxu0 0
    %1733 = vmatpush1.bf16.msra.mxu0 0
    %1734 = vmatprep.subr.bf16.mxu0 0
    %1735 = vmatpush1.bf16.msra.mxu0 0
    %1736 = vmatprep.subr.bf16.mxu0 0
    %1737 = vmatpush1.bf16.msra.mxu0 0
    %1738 = vmatprep.subr.bf16.mxu0 0
    %1739 = vmatpush1.bf16.msra.mxu0 0
    %1740 = vmatprep.subr.bf16.mxu0 0
    %1741 = vmatpush1.bf16.msra.mxu0 0
    %1742 = vmatprep.subr.bf16.mxu0 0
    %1743 = vmatpush1.bf16.msra.mxu0 0
    %1744 = vmatprep.subr.bf16.mxu0 0
    %1745 = vmatpush1.bf16.msra.mxu0 0
    %1746 = vmatprep.subr.bf16.mxu0 0
    %1747 = vmatpush1.bf16.msra.mxu0 0
    %1748 = vmatprep.subr.bf16.mxu0 0
    %1749 = vmatpush1.bf16.msra.mxu0 0
    %1750 = vmatprep.subr.bf16.mxu0 0
    %1751 = vmatpush1.bf16.msra.mxu0 0
    %1752 = vmatprep.mubr.bf16.mxu0 0
    %1753 = vmatmul.mubr.bf16.gmra.mrb[0].mxu0 %v1718
    %v1754 = vpop.f32.mrb[0].mxu0
    %v1755 = vadd.f32 0.0, %v1754
    %v1756 = vpop.f32.mrb[0].mxu0
    %v1757 = vpop.f32.mrb[0].mxu0
    %v1758 = vpop.f32.mrb[0].mxu0
    %1759 = vdwg.mxu0
    %v1760 = vadd.f32 %v1712, %v1755
    %v1761 = vxor.u32 %v1760, 2147483648
    %v1762 = vmul.f32 %v1761, 1.442695
    %v1763 = vpow.pop %v1762
    %v1764 = vadd.f32 %v1763, 1.0
    %v1765 = vrcp.pop %v1764
    %v1766 = vmul.f32 1.0, %v1765
    %v1767 = vtanh.pop %v1760
    %v1768 = vmul.f32 %v1766, %v1617
    %1770 = vrot.lane.b32.xlu0 %v1767, 32
    %v1771 = vpop.permute.xlu0 %1770
    %v1773 = vmul.f32 %v1766, %v1771
    %1775 = vrot.lane.b32.xlu0 %v1773, 32
    %v1776 = vpop.permute.xlu0 %1775
    %v1778 = vadd.f32 %v1768, %v1776
    %v1779 = vtanh.pop %v1778
    %1781 = vrot.lane.b32.xlu0 %v1779, 32
    %v1782 = vpop.permute.xlu0 %1781
    %v1784 = vmul.f32 %v1766, %v1782
    %v1785 = vld [vmem:[%s1] sm:$0xff]
    %v1786 = vsub.f32 %v1784, %v1614
    %1788 = vset.pattern.permute.xlu0 0
    %1789 = vperm.xlu0 %1788, %v1785
    %v1790 = vpop.permute.xlu0 %1789
    %v1792 = vmul.f32 %v1790, %v1786
    %v1793 = vadd.f32 %v1614, %v1792
    %v1794 = vmul.f32 %v1793, %v1790
    %1796 = vrot.lane.b32.xlu0 %v1794, 96
    %v1797 = vpop.permute.xlu0 %1796
    %1799 = vst.msk [vmem:[#allocation3] sm:$0xff] %vm500, %v1797
    // Predicated region
    $region34: #{tpu_custom_call.1} parent=1 // pred_check
      _
    $region35: #{tpu_custom_call.1} parent=1 // pred_check_branch
      %1801 = sbr.rel (0) target = $region37
    $region36: #{tpu_custom_call.1} parent=1 // pred_region
      %s1803 = ssub.s32 1024, 1024
      %1804 = vsyncadd [#allocation4], %s1803
      %s1805 = sshll.u32 [#allocation3], 4
      %s1806 = int_to_ptr.vmem [resolvable:$true] %s1805
      %1811 = dma.vmem_to_hbm [thread:$0]  %s1806, 1024, %s8, [#allocation4], 128, 128, 8
    $region37: #{tpu_custom_call.1} parent=1 // pred_fallthru
      _
    // Predicated region
    $region38: #{tpu_custom_call.1} parent=1 // pred_check
      _
    $region39: #{tpu_custom_call.1} parent=1 // pred_check_branch
      %1813 = sbr.rel (0) target = $region41
    $region40: #{tpu_custom_call.1} parent=1 // pred_region
      %1814 = dma.done [#allocation4], 1024
    $region41: #{tpu_custom_call.1} parent=1 // pred_fallthru
      _
    %1815 = vsyncpa [#allocation4], 1

</llo_original>
